<compile_context>
chip_gen: v6e
topology: v6e:2x2x1
jax: 0.10.0
libtpu: 0.0.40
codegen_flags: <defaults>
</compile_context>

<pallas_src>
import functools

import jax
import jax.numpy as jnp
import numpy as np
from jax.experimental import pallas as pl
from jax.experimental.pallas import tpu as pltpu


def _loss_kernel(x_ref, ty_ref,
                 w1r_ref, b1r_ref, w2r_ref, b2r_ref,     # representer MLP (all f32)
                 wh_ref, bh_ref,                          # fused treat|cont first layer [out, 2*out] (bf16 W, f32 b)
                 wf_ref,                                  # block-diag final projection  [2*out, 2]  (f32)
                 b2s_ref,                                 # [1, 2] final biases (SMEM, f32)
                 out_ref,                                 # (1, 8, 128) per-tile partial sum (VMEM)
                 *, tile_n, n_rows, inv_n):
    i = pl.program_id(0)

    # ---- representer MLP: relu(l1) -> l2 -> dropout(identity) -> relu, all f32 ----
    x = x_ref[...]                                                           # f32 [tile_n, in]
    h1 = jnp.maximum(
        jnp.dot(x, w1r_ref[...], preferred_element_type=jnp.float32) + b1r_ref[...], 0.0)
    rep = jnp.dot(h1, w2r_ref[...], preferred_element_type=jnp.float32) + b2r_ref[...]
    h = jnp.maximum(rep, 0.0)                                                # f32 [tile_n, out]

    # ---- fused treat|cont first layers: ONE wide bf16 MXU dot, f32 accumulate ----
    hh = jnp.maximum(
        jnp.dot(h.astype(jnp.bfloat16), wh_ref[...],
                preferred_element_type=jnp.float32) + bh_ref[...], 0.0)      # f32 [tile_n, 2*out]

    # ---- final projections as a second (f32) MXU dot against a block-diagonal matrix ----
    # column 0 = treat head (wt2), column 1 = cont head (wc2); replaces the VPU multiply
    # + XLU cross-lane reduction of the previous version.
    proj = jnp.dot(hh, wf_ref[...], preferred_element_type=jnp.float32)      # [tile_n, 2]

    ty = ty_ref[...]                                                         # f32 [tile_n, 2]
    t_col = ty[:, 0:1]
    y_col = ty[:, 1:2]
    is_treat = (t_col == 1.0)

    pred = (jnp.where(is_treat, proj[:, 0:1], proj[:, 1:2])
            + jnp.where(is_treat, b2s_ref[0, 0], b2s_ref[0, 1]))             # [tile_n, 1]

    # mask rows beyond the true batch size (zero-padded tail of the last tile)
    row = jax.lax.broadcasted_iota(jnp.int32, (tile_n, 1), 0) + i * tile_n
    valid = (row < n_rows).astype(jnp.float32)
    diff = (pred - y_col) * valid
    partial = jnp.sum(diff * diff) * inv_n                                   # scalar f32

    out_ref[...] = jnp.full(out_ref.shape, partial, dtype=jnp.float32)


def model_forward_loss(x, t, y, params, *, tile_n=None):
    """x: [N, in_dim] f32; t, y: [N] f32 (t MUST be binary 0/1). Returns scalar MSE loss."""
    N, in_dim = x.shape
    out_dim = params["w2r"].shape[1]
    f32 = jnp.float32

    if tile_n is None:
        # multiple of 256 (fills the 256-row MXU on v6e/v7x); single grid step for small N
        tile_n = min(512, ((N + 255) // 256) * 256)
    n_tiles = (N + tile_n - 1) // tile_n
    n_pad = n_tiles * tile_n
    pad = n_pad - N

    # batch-tiled inputs; explicit zero padding keeps tail rows finite (masked in kernel)
    xb = jnp.pad(x.astype(f32), ((0, pad), (0, 0)))
    ty = jnp.pad(jnp.stack([t.astype(f32), y.astype(f32)], axis=1), ((0, pad), (0, 0)))

    # resident weights: f32 representer, fused bf16 treat|cont first layer,
    # block-diagonal f32 final projection, final biases packed into SMEM.
    w1r = params["w1r"].astype(f32)
    b1r = params["b1r"].astype(f32)
    w2r = params["w2r"].astype(f32)
    b2r = params["b2r"].astype(f32)
    wh = jnp.concatenate([params["wt1"], params["wc1"]], axis=1).astype(jnp.bfloat16)  # [out, 2*out]
    bh = jnp.concatenate([params["bt1"], params["bc1"]], axis=1).astype(f32)            # [1, 2*out]
    zcol = jnp.zeros((out_dim, 1), f32)
    wf = jnp.concatenate(
        [jnp.concatenate([params["wt2"].T.astype(f32), zcol], axis=0),   # col 0: treat
         jnp.concatenate([zcol, params["wc2"].T.astype(f32)], axis=0)],  # col 1: cont
        axis=1)                                                          # [2*out, 2]
    b2s = jnp.concatenate([params["bt2"], params["bc2"]], axis=1).astype(f32)           # [1, 2]

    kern = functools.partial(_loss_kernel, tile_n=tile_n, n_rows=N, inv_n=1.0 / N)

    def resident(a):  # whole array in VMEM, constant block index => stays resident across grid
        return pl.BlockSpec(a.shape, lambda i: (0, 0))

    flops = 2 * n_pad * (in_dim * in_dim + in_dim * out_dim
                         + out_dim * 2 * out_dim + 2 * out_dim * 2)
    bytes_accessed = int((xb.size + ty.size) * 4
                         + (w1r.size + b1r.size + w2r.size + b2r.size) * 4
                         + wh.size * 2 + (bh.size + wf.size + b2s.size) * 4
                         + n_tiles * 8 * 128 * 4)

    partials = pl.pallas_call(
        kern,
        out_shape=jax.ShapeDtypeStruct((n_tiles, 8, 128), jnp.float32),
        grid=(n_tiles,),
        in_specs=[
            pl.BlockSpec((tile_n, in_dim), lambda i: (i, 0)),   # x tile (f32)
            pl.BlockSpec((tile_n, 2), lambda i: (i, 0)),        # packed t|y tile
            resident(w1r), resident(b1r),
            resident(w2r), resident(b2r),
            resident(wh), resident(bh), resident(wf),
            pl.BlockSpec(memory_space=pltpu.MemorySpace.SMEM),  # packed final biases
        ],
        out_specs=pl.BlockSpec((1, 8, 128), lambda i: (i, 0, 0)),
        compiler_params=pltpu.CompilerParams(
            dimension_semantics=("parallel",)),                 # independent per-tile partials
        cost_estimate=pl.CostEstimate(flops=flops, transcendentals=0,
                                      bytes_accessed=bytes_accessed),
    )(xb, ty, w1r, b1r, w2r, b2r, wh, bh, wf, b2s)

    # tiny final reduction over per-tile partials (inv_n already folded in)
    return jnp.sum(partials[:, 0, 0])


def _init_params(key, in_dim, out_dim):
    """Deterministic parameter init mirroring the module's shapes.
    Hidden-layer weight matrices are stored pre-transposed as [in, out];
    the 1-output final weights (wt2/wc2) are stored PyTorch-style as [1, out]."""
    ks = jax.random.split(key, 12)
    f32 = jnp.float32

    def w(k, shape, std):
        return jax.random.normal(k, shape, dtype=f32) * std

    def b(k, shape, bound):
        return jax.random.uniform(k, shape, dtype=f32, minval=-bound, maxval=bound)

    s_rep = 0.1 / np.sqrt(in_dim)
    s_head = 0.1 / np.sqrt(out_dim)
    return {
        # representer MLP(in_dim -> in_dim -> out_dim)
        "w1r": w(ks[0], (in_dim, in_dim), s_rep),
        "b1r": b(ks[1], (1, in_dim), 1.0 / np.sqrt(in_dim)),
        "w2r": w(ks[2], (in_dim, out_dim), s_rep),
        "b2r": b(ks[3], (1, out_dim), 1.0 / np.sqrt(in_dim)),
        # treat MLP(out_dim -> out_dim -> 1)
        "wt1": w(ks[4], (out_dim, out_dim), s_head),
        "bt1": b(ks[5], (1, out_dim), 1.0 / np.sqrt(out_dim)),
        "wt2": w(ks[6], (1, out_dim), s_head),
        "bt2": b(ks[7], (1, 1), 1.0 / np.sqrt(out_dim)),
        # cont MLP(out_dim -> out_dim -> 1)
        "wc1": w(ks[8], (out_dim, out_dim), s_head),
        "bc1": b(ks[9], (1, out_dim), 1.0 / np.sqrt(out_dim)),
        "wc2": w(ks[10], (1, out_dim), s_head),
        "bc2": b(ks[11], (1, 1), 1.0 / np.sqrt(out_dim)),
    }


def _reference_loss(x, t, y, p):
    """Plain-JAX f32 reference of the PyTorch forward (eval mode), concat/mask form."""
    h1 = jnp.maximum(x @ p["w1r"] + p["b1r"], 0.0)
    rep = h1 @ p["w2r"] + p["b2r"]
    h = jnp.maximum(rep, 0.0)
    th = jnp.maximum(h @ p["wt1"] + p["bt1"], 0.0)
    xt = (th @ p["wt2"].T + p["bt2"]).reshape(-1)
    ch = jnp.maximum(h @ p["wc1"] + p["bc1"], 0.0)
    xc = (ch @ p["wc2"].T + p["bc2"]).reshape(-1)
    pred = jnp.concatenate([xt[t == 1.0], xc[t == 0.0]])
    targ = jnp.concatenate([y[t == 1.0], y[t == 0.0]])
    return jnp.mean((pred - targ) ** 2)


if __name__ == "__main__":
    N, IN_DIM, OUT_DIM = 200, 32, 256   # N not a multiple of the tile -> exercises masking

    key = jax.random.PRNGKey(0)
    k_x, k_t, k_y, k_p = jax.random.split(key, 4)

    x = jax.random.normal(k_x, (N, IN_DIM), dtype=jnp.float32)
    t = (jax.random.uniform(k_t, (N,)) > 0.5).astype(jnp.float32)   # strictly binary treatment
    y = jax.random.normal(k_y, (N,), dtype=jnp.float32)
    params = _init_params(k_p, IN_DIM, OUT_DIM)

    loss = jax.block_until_ready(model_forward_loss(x, t, y, params))
    ref = jax.block_until_ready(_reference_loss(x, t, y, params))

    # only the wide head matmul runs in bf16 (f32 accumulate); everything else is f32.
    np.testing.assert_allclose(np.asarray(loss), np.asarray(ref), rtol=2e-2, atol=1e-4)

    print("KERNEL_OK")
</pallas_src>

<mosaic_0001>
module attributes {stable_mosaic.version = 11 : i64} {
  func.func @_loss_kernel(%arg0: i32, %arg1: memref<256x32xf32, #tpu.memory_space<vmem>>, %arg2: memref<256x2xf32, #tpu.memory_space<vmem>>, %arg3: memref<32x32xf32, #tpu.memory_space<vmem>>, %arg4: memref<1x32xf32, #tpu.memory_space<vmem>>, %arg5: memref<32x256xf32, #tpu.memory_space<vmem>>, %arg6: memref<1x256xf32, #tpu.memory_space<vmem>>, %arg7: memref<256x512xbf16, #tpu.memory_space<vmem>>, %arg8: memref<1x512xf32, #tpu.memory_space<vmem>>, %arg9: memref<512x2xf32, #tpu.memory_space<vmem>>, %arg10: memref<1x2xf32, #tpu.memory_space<smem>>, %arg11: memref<1x8x128xf32, #tpu.memory_space<vmem>>) attributes {dimension_semantics = [#tpu.dimension_semantics<parallel>], iteration_bounds = array<i64: 1>, scalar_prefetch = 0 : i64, scratch_operands = 0 : i64, tpu.core_type = #tpu.core_type<tc>, window_params = [{transform_indices = @transform_0, window_bounds = array<i64: 256, 32>}, {transform_indices = @transform_1, window_bounds = array<i64: 256, 2>}, {pipeline_mode = #tpu.pipeline_mode<synchronous>, transform_indices = @transform_2, window_bounds = array<i64: 32, 32>}, {pipeline_mode = #tpu.pipeline_mode<synchronous>, transform_indices = @transform_3, window_bounds = array<i64: 1, 32>}, {pipeline_mode = #tpu.pipeline_mode<synchronous>, transform_indices = @transform_4, window_bounds = array<i64: 32, 256>}, {pipeline_mode = #tpu.pipeline_mode<synchronous>, transform_indices = @transform_5, window_bounds = array<i64: 1, 256>}, {pipeline_mode = #tpu.pipeline_mode<synchronous>, transform_indices = @transform_6, window_bounds = array<i64: 256, 512>}, {pipeline_mode = #tpu.pipeline_mode<synchronous>, transform_indices = @transform_7, window_bounds = array<i64: 1, 512>}, {pipeline_mode = #tpu.pipeline_mode<synchronous>, transform_indices = @transform_8, window_bounds = array<i64: 512, 2>}, {transform_indices = @transform_9, window_bounds = array<i64: 1, 2>}, {transform_indices = @transform_10, window_bounds = array<i64: 1, 8, 128>}]} {
    %c0 = arith.constant 0 : index
    %c0_0 = arith.constant 0 : index
    %0 = vector.load %arg1[%c0, %c0_0] : memref<256x32xf32, #tpu.memory_space<vmem>>, vector<256x32xf32>
    %c0_1 = arith.constant 0 : index
    %c0_2 = arith.constant 0 : index
    %1 = vector.load %arg3[%c0_1, %c0_2] : memref<32x32xf32, #tpu.memory_space<vmem>>, vector<32x32xf32>
    %cst = arith.constant dense<0.000000e+00> : vector<256x32xf32>
    %2 = tpu.matmul %0, %1, %cst {dimension_numbers = #tpu.dot_dimension_numbers<[1], [0], [0], [1], [0, 0, 1, 1], [], []>} : vector<256x32xf32>, vector<32x32xf32>, vector<256x32xf32> -> vector<256x32xf32>
    %c0_3 = arith.constant 0 : index
    %c0_4 = arith.constant 0 : index
    %3 = vector.load %arg4[%c0_3, %c0_4] : memref<1x32xf32, #tpu.memory_space<vmem>>, vector<1x32xf32>
    %4 = vector.broadcast %3 : vector<1x32xf32> to vector<256x32xf32>
    %5 = arith.addf %2, %4 : vector<256x32xf32>
    %cst_5 = arith.constant 0.000000e+00 : f32
    %6 = vector.broadcast %cst_5 : f32 to vector<256x32xf32>
    %7 = arith.maximumf %5, %6 : vector<256x32xf32>
    %c0_6 = arith.constant 0 : index
    %c0_7 = arith.constant 0 : index
    %8 = vector.load %arg5[%c0_6, %c0_7] : memref<32x256xf32, #tpu.memory_space<vmem>>, vector<32x256xf32>
    %cst_8 = arith.constant dense<0.000000e+00> : vector<256x256xf32>
    %9 = tpu.matmul %7, %8, %cst_8 {dimension_numbers = #tpu.dot_dimension_numbers<[1], [0], [0], [1], [0, 0, 1, 1], [], []>} : vector<256x32xf32>, vector<32x256xf32>, vector<256x256xf32> -> vector<256x256xf32>
    %c0_9 = arith.constant 0 : index
    %c0_10 = arith.constant 0 : index
    %10 = vector.load %arg6[%c0_9, %c0_10] : memref<1x256xf32, #tpu.memory_space<vmem>>, vector<1x256xf32>
    %11 = vector.broadcast %10 : vector<1x256xf32> to vector<256x256xf32>
    %12 = arith.addf %9, %11 : vector<256x256xf32>
    %cst_11 = arith.constant 0.000000e+00 : f32
    %13 = vector.broadcast %cst_11 : f32 to vector<256x256xf32>
    %14 = arith.maximumf %12, %13 : vector<256x256xf32>
    %15 = arith.truncf %14 : vector<256x256xf32> to vector<256x256xbf16>
    %c0_12 = arith.constant 0 : index
    %c0_13 = arith.constant 0 : index
    %16 = vector.load %arg7[%c0_12, %c0_13] : memref<256x512xbf16, #tpu.memory_space<vmem>>, vector<256x512xbf16>
    %cst_14 = arith.constant dense<0.000000e+00> : vector<256x512xf32>
    %17 = tpu.matmul %15, %16, %cst_14 {dimension_numbers = #tpu.dot_dimension_numbers<[1], [0], [0], [1], [0, 0, 1, 1], [], []>} : vector<256x256xbf16>, vector<256x512xbf16>, vector<256x512xf32> -> vector<256x512xf32>
    %c0_15 = arith.constant 0 : index
    %c0_16 = arith.constant 0 : index
    %18 = vector.load %arg8[%c0_15, %c0_16] : memref<1x512xf32, #tpu.memory_space<vmem>>, vector<1x512xf32>
    %19 = vector.broadcast %18 : vector<1x512xf32> to vector<256x512xf32>
    %20 = arith.addf %17, %19 : vector<256x512xf32>
    %cst_17 = arith.constant 0.000000e+00 : f32
    %21 = vector.broadcast %cst_17 : f32 to vector<256x512xf32>
    %22 = arith.maximumf %20, %21 : vector<256x512xf32>
    %c0_18 = arith.constant 0 : index
    %c0_19 = arith.constant 0 : index
    %23 = vector.load %arg9[%c0_18, %c0_19] : memref<512x2xf32, #tpu.memory_space<vmem>>, vector<512x2xf32>
    %cst_20 = arith.constant dense<0.000000e+00> : vector<256x2xf32>
    %24 = tpu.matmul %22, %23, %cst_20 {dimension_numbers = #tpu.dot_dimension_numbers<[1], [0], [0], [1], [0, 0, 1, 1], [], []>} : vector<256x512xf32>, vector<512x2xf32>, vector<256x2xf32> -> vector<256x2xf32>
    %c0_21 = arith.constant 0 : index
    %c0_22 = arith.constant 0 : index
    %25 = vector.load %arg2[%c0_21, %c0_22] : memref<256x2xf32, #tpu.memory_space<vmem>>, vector<256x2xf32>
    %26 = vector.extract_strided_slice %25 {offsets = [0, 0], sizes = [256, 1], strides = [1, 1]} : vector<256x2xf32> to vector<256x1xf32>
    %27 = vector.extract_strided_slice %25 {offsets = [0, 1], sizes = [256, 1], strides = [1, 1]} : vector<256x2xf32> to vector<256x1xf32>
    %cst_23 = arith.constant 1.000000e+00 : f32
    %28 = vector.broadcast %cst_23 : f32 to vector<256x1xf32>
    %29 = arith.cmpf oeq, %26, %28 : vector<256x1xf32>
    %30 = vector.extract_strided_slice %24 {offsets = [0, 0], sizes = [256, 1], strides = [1, 1]} : vector<256x2xf32> to vector<256x1xf32>
    %31 = vector.extract_strided_slice %24 {offsets = [0, 1], sizes = [256, 1], strides = [1, 1]} : vector<256x2xf32> to vector<256x1xf32>
    %32 = arith.select %29, %30, %31 : vector<256x1xi1>, vector<256x1xf32>
    %c0_24 = arith.constant 0 : index
    %c0_25 = arith.constant 0 : index
    %33 = memref.load %arg10[%c0_24, %c0_25] : memref<1x2xf32, #tpu.memory_space<smem>>
    %c0_26 = arith.constant 0 : index
    %c1 = arith.constant 1 : index
    %34 = memref.load %arg10[%c0_26, %c1] : memref<1x2xf32, #tpu.memory_space<smem>>
    %35 = vector.broadcast %33 : f32 to vector<256x1xf32>
    %36 = vector.broadcast %34 : f32 to vector<256x1xf32>
    %37 = arith.select %29, %35, %36 : vector<256x1xi1>, vector<256x1xf32>
    %38 = arith.addf %32, %37 : vector<256x1xf32>
    %39 = tpu.iota {dimensions = array<i32: 0>} : vector<256x1xi32>
    %c256_i32 = arith.constant 256 : i32
    %40 = arith.muli %arg0, %c256_i32 : i32
    %41 = vector.broadcast %40 : i32 to vector<256x1xi32>
    %42 = arith.addi %39, %41 : vector<256x1xi32>
    %c200_i32 = arith.constant 200 : i32
    %43 = vector.broadcast %c200_i32 : i32 to vector<256x1xi32>
    %44 = arith.cmpi slt, %42, %43 : vector<256x1xi32>
    %45 = arith.extui %44 : vector<256x1xi1> to vector<256x1xi32>
    %46 = arith.sitofp %45 : vector<256x1xi32> to vector<256x1xf32>
    %47 = arith.subf %38, %27 : vector<256x1xf32>
    %48 = arith.mulf %47, %46 : vector<256x1xf32>
    %49 = arith.mulf %48, %48 : vector<256x1xf32>
    %50 = vector.shape_cast %49 : vector<256x1xf32> to vector<1x256x1xf32>
    %cst_27 = arith.constant dense<0.000000e+00> : vector<1xf32>
    %51 = vector.multi_reduction <add>, %50, %cst_27 [1, 2] : vector<1x256x1xf32> to vector<1xf32>
    %52 = vector.shape_cast %51 : vector<1xf32> to vector<1x1x1xf32>
    %53 = vector.extract %52[0, 0, 0] : f32 from vector<1x1x1xf32>
    %cst_28 = arith.constant 5.000000e-03 : f32
    %54 = arith.mulf %53, %cst_28 : f32
    %55 = vector.broadcast %54 : f32 to vector<1x8x128xf32>
    %c0_29 = arith.constant 0 : index
    %c0_30 = arith.constant 0 : index
    %c0_31 = arith.constant 0 : index
    %56 = vector.load %arg11[%c0_29, %c0_30, %c0_31] : memref<1x8x128xf32, #tpu.memory_space<vmem>>, vector<1x8x128xf32>
    tpu.vector_store %arg11[%c0_29, %c0_30, %c0_31], %55 {strides = array<i32>} : memref<1x8x128xf32, #tpu.memory_space<vmem>>, vector<1x8x128xf32>,
    return
  }
  func.func @transform_0(%arg0: i32) -> (i32, i32) {
    %c0_i32 = arith.constant 0 : i32
    %c0_i32_0 = arith.constant 0 : i32
    return %arg0, %c0_i32 : i32, i32
  }
  func.func @transform_1(%arg0: i32) -> (i32, i32) {
    %c0_i32 = arith.constant 0 : i32
    %c0_i32_0 = arith.constant 0 : i32
    return %arg0, %c0_i32 : i32, i32
  }
  func.func @transform_2(%arg0: i32) -> (i32, i32) {
    %c0_i32 = arith.constant 0 : i32
    %c0_i32_0 = arith.constant 0 : i32
    %c0_i32_1 = arith.constant 0 : i32
    return %c0_i32, %c0_i32_0 : i32, i32
  }
  func.func @transform_3(%arg0: i32) -> (i32, i32) {
    %c0_i32 = arith.constant 0 : i32
    %c0_i32_0 = arith.constant 0 : i32
    %c0_i32_1 = arith.constant 0 : i32
    return %c0_i32, %c0_i32_0 : i32, i32
  }
  func.func @transform_4(%arg0: i32) -> (i32, i32) {
    %c0_i32 = arith.constant 0 : i32
    %c0_i32_0 = arith.constant 0 : i32
    %c0_i32_1 = arith.constant 0 : i32
    return %c0_i32, %c0_i32_0 : i32, i32
  }
  func.func @transform_5(%arg0: i32) -> (i32, i32) {
    %c0_i32 = arith.constant 0 : i32
    %c0_i32_0 = arith.constant 0 : i32
    %c0_i32_1 = arith.constant 0 : i32
    return %c0_i32, %c0_i32_0 : i32, i32
  }
  func.func @transform_6(%arg0: i32) -> (i32, i32) {
    %c0_i32 = arith.constant 0 : i32
    %c0_i32_0 = arith.constant 0 : i32
    %c0_i32_1 = arith.constant 0 : i32
    return %c0_i32, %c0_i32_0 : i32, i32
  }
  func.func @transform_7(%arg0: i32) -> (i32, i32) {
    %c0_i32 = arith.constant 0 : i32
    %c0_i32_0 = arith.constant 0 : i32
    %c0_i32_1 = arith.constant 0 : i32
    return %c0_i32, %c0_i32_0 : i32, i32
  }
  func.func @transform_8(%arg0: i32) -> (i32, i32) {
    %c0_i32 = arith.constant 0 : i32
    %c0_i32_0 = arith.constant 0 : i32
    %c0_i32_1 = arith.constant 0 : i32
    return %c0_i32, %c0_i32_0 : i32, i32
  }
  func.func @transform_9(%arg0: i32) -> (i32, i32) {
    %c0_i32 = arith.constant 0 : i32
    %c0_i32_0 = arith.constant 0 : i32
    %c0_i32_1 = arith.constant 0 : i32
    return %c0_i32, %c0_i32_0 : i32, i32
  }
  func.func @transform_10(%arg0: i32) -> (i32, i32, i32) {
    %c0_i32 = arith.constant 0 : i32
    %c0_i32_0 = arith.constant 0 : i32
    %c0_i32_1 = arith.constant 0 : i32
    return %arg0, %c0_i32, %c0_i32_0 : i32, i32, i32
  }
}

</mosaic_0001>

<llo_original>
// kernel: tpu_custom_call.1
$region0: #{tpu_custom_call.1}
  #allocation0 [shape = 'u32[]', space=smem, size = 0x4, offset = 0x4, fixed_abs, tag = 'smem constant byte address 0x4 - core index']
  #allocation1 [shape = 'u32[144,128]{1,0:T(1,128)}', space=vmem, size = 0x12000, scoped, tag = 'internal scratch']
  %s0 = inlined_call_operand.vmem [shape: f32[256,32], index: 0, kind: input, shape index: {}]
  %s1 = inlined_call_operand.vmem [shape: f32[256,2], index: 1, kind: input, shape index: {}]
  %s2 = inlined_call_operand.vmem [shape: f32[32,32], index: 2, kind: input, shape index: {}]
  %s3 = inlined_call_operand.vmem [shape: f32[1,32], index: 3, kind: input, shape index: {}]
  %s4 = inlined_call_operand.vmem [shape: f32[32,256], index: 4, kind: input, shape index: {}]
  %s5 = inlined_call_operand.vmem [shape: f32[1,256], index: 5, kind: input, shape index: {}]
  %s6 = inlined_call_operand.vmem [shape: bf16[256,512], index: 6, kind: input, shape index: {}]
  %s7 = inlined_call_operand.vmem [shape: f32[1,512], index: 7, kind: input, shape index: {}]
  %s8 = inlined_call_operand.vmem [shape: f32[512,2], index: 8, kind: input, shape index: {}]
  %s9 = inlined_call_operand.vmem [shape: f32[1,2], index: 9, kind: input, shape index: {}]
  %s10 = inlined_call_operand.hbm [shape: f32[1,8,128], index: 10, kind: output, shape index: {}]
  %s11 = sld [smem:[#allocation0]]
  $region54: #{tpu_custom_call.1} parent=0
    _
  %s13 = ssub.s32 1, %s11
  %s14 = scalar_select 0, %s13, %s11
  $region1: #{tpu_custom_call.1} parent=0
    #allocation2 [shape = 'u8[512]{0}', space=smem, size = 0x200, scoped, tag = 'input window, operand 9, single buffered']
    #allocation3 [shape = 's32[1]{0}', space=sflag, size = 0x4, scoped, tag = 'scoped memory for tpu_custom_call.1']
    #allocation4 [shape = 's32[1]{0}', space=sflag, size = 0x4, scoped, tag = 'scoped memory for tpu_custom_call.1']
    #allocation5 [shape = 'u8[4096]{0}', space=vmem, size = 0x1000, scoped, tag = 'output window, operand 0, single buffered']
    %15 = vsyncpa [#allocation4], 0
    %16 = vsyncpa [#allocation3], 0
    // Predicated region
    $region2: #{tpu_custom_call.1} parent=1 // pred_check
      _
    $region3: #{tpu_custom_call.1} parent=1 // pred_check_branch
      %18 = sbr.rel (0) target = $region5
    $region4: #{tpu_custom_call.1} parent=1 // pred_region
      _
    $region5: #{tpu_custom_call.1} parent=1 // pred_fallthru
      _
    // Predicated region
    $region6: #{tpu_custom_call.1} parent=1 // pred_check
      _
    $region7: #{tpu_custom_call.1} parent=1 // pred_check_branch
      %20 = sbr.rel (0) target = $region9
    $region8: #{tpu_custom_call.1} parent=1 // pred_region
      _
    $region9: #{tpu_custom_call.1} parent=1 // pred_fallthru
      _
    // Predicated region
    $region10: #{tpu_custom_call.1} parent=1 // pred_check
      _
    $region11: #{tpu_custom_call.1} parent=1 // pred_check_branch
      %22 = sbr.rel (0) target = $region13
    $region12: #{tpu_custom_call.1} parent=1 // pred_region
      _
    $region13: #{tpu_custom_call.1} parent=1 // pred_fallthru
      _
    // Predicated region
    $region14: #{tpu_custom_call.1} parent=1 // pred_check
      _
    $region15: #{tpu_custom_call.1} parent=1 // pred_check_branch
      %24 = sbr.rel (0) target = $region17
    $region16: #{tpu_custom_call.1} parent=1 // pred_region
      _
    $region17: #{tpu_custom_call.1} parent=1 // pred_fallthru
      _
    // Predicated region
    $region18: #{tpu_custom_call.1} parent=1 // pred_check
      _
    $region19: #{tpu_custom_call.1} parent=1 // pred_check_branch
      %26 = sbr.rel (0) target = $region21
    $region20: #{tpu_custom_call.1} parent=1 // pred_region
      _
    $region21: #{tpu_custom_call.1} parent=1 // pred_fallthru
      _
    // Predicated region
    $region22: #{tpu_custom_call.1} parent=1 // pred_check
      _
    $region23: #{tpu_custom_call.1} parent=1 // pred_check_branch
      %28 = sbr.rel (0) target = $region25
    $region24: #{tpu_custom_call.1} parent=1 // pred_region
      _
    $region25: #{tpu_custom_call.1} parent=1 // pred_fallthru
      _
    // Predicated region
    $region26: #{tpu_custom_call.1} parent=1 // pred_check
      _
    $region27: #{tpu_custom_call.1} parent=1 // pred_check_branch
      %30 = sbr.rel (0) target = $region29
    $region28: #{tpu_custom_call.1} parent=1 // pred_region
      _
    $region29: #{tpu_custom_call.1} parent=1 // pred_fallthru
      _
    // Predicated region
    $region30: #{tpu_custom_call.1} parent=1 // pred_check
      _
    $region31: #{tpu_custom_call.1} parent=1 // pred_check_branch
      %32 = sbr.rel (0) target = $region33
    $region32: #{tpu_custom_call.1} parent=1 // pred_region
      _
    $region33: #{tpu_custom_call.1} parent=1 // pred_fallthru
      _
    // Predicated region
    $region34: #{tpu_custom_call.1} parent=1 // pred_check
      _
    $region35: #{tpu_custom_call.1} parent=1 // pred_check_branch
      %34 = sbr.rel (0) target = $region37
    $region36: #{tpu_custom_call.1} parent=1 // pred_region
      _
    $region37: #{tpu_custom_call.1} parent=1 // pred_fallthru
      _
    // Predicated region
    $region38: #{tpu_custom_call.1} parent=1 // pred_check
      _
    $region39: #{tpu_custom_call.1} parent=1 // pred_check_branch
      %36 = sbr.rel (0) target = $region41
    $region40: #{tpu_custom_call.1} parent=1 // pred_region
      %s38 = ssub.s32 16, 16
      %39 = vsyncadd [#allocation4], %s38
      %s41 = sshll.u32 %s9, 4
      %s42 = int_to_ptr.vmem [resolvable:$true] %s41
      %44 = dma.vmem_to_smem %s42, 16, [#allocation2], [#allocation4]
    $region41: #{tpu_custom_call.1} parent=1 // pred_fallthru
      _
    // Predicated region
    $region42: #{tpu_custom_call.1} parent=1 // pred_check
      _
    $region43: #{tpu_custom_call.1} parent=1 // pred_check_branch
      %46 = sbr.rel (0) target = $region45
    $region44: #{tpu_custom_call.1} parent=1 // pred_region
      %47 = dma.done [#allocation4], 16
    $region45: #{tpu_custom_call.1} parent=1 // pred_fallthru
      _
    %48 = sfence
    %v49 = vld [vmem:[%s0] sm:$0xff]
    %v50 = vld [vmem:[%s0 + $0x8] sm:$0xff]
    %v51 = vld [vmem:[%s0 + $0x10] sm:$0xff]
    %v52 = vld [vmem:[%s0 + $0x18] sm:$0xff]
    %v53 = vld [vmem:[%s0 + $0x20] sm:$0xff]
    %v54 = vld [vmem:[%s0 + $0x28] sm:$0xff]
    %v55 = vld [vmem:[%s0 + $0x30] sm:$0xff]
    %v56 = vld [vmem:[%s0 + $0x38] sm:$0xff]
    %v57 = vld [vmem:[%s0 + $0x40] sm:$0xff]
    %v58 = vld [vmem:[%s0 + $0x48] sm:$0xff]
    %v59 = vld [vmem:[%s0 + $0x50] sm:$0xff]
    %v60 = vld [vmem:[%s0 + $0x58] sm:$0xff]
    %v61 = vld [vmem:[%s0 + $0x60] sm:$0xff]
    %v62 = vld [vmem:[%s0 + $0x68] sm:$0xff]
    %v63 = vld [vmem:[%s0 + $0x70] sm:$0xff]
    %v64 = vld [vmem:[%s0 + $0x78] sm:$0xff]
    %v65 = vld [vmem:[%s0 + $0x80] sm:$0xff]
    %v66 = vld [vmem:[%s0 + $0x88] sm:$0xff]
    %v67 = vld [vmem:[%s0 + $0x90] sm:$0xff]
    %v68 = vld [vmem:[%s0 + $0x98] sm:$0xff]
    %v69 = vld [vmem:[%s0 + $0xa0] sm:$0xff]
    %v70 = vld [vmem:[%s0 + $0xa8] sm:$0xff]
    %v71 = vld [vmem:[%s0 + $0xb0] sm:$0xff]
    %v72 = vld [vmem:[%s0 + $0xb8] sm:$0xff]
    %v73 = vld [vmem:[%s0 + $0xc0] sm:$0xff]
    %v74 = vld [vmem:[%s0 + $0xc8] sm:$0xff]
    %v75 = vld [vmem:[%s0 + $0xd0] sm:$0xff]
    %v76 = vld [vmem:[%s0 + $0xd8] sm:$0xff]
    %v77 = vld [vmem:[%s0 + $0xe0] sm:$0xff]
    %v78 = vld [vmem:[%s0 + $0xe8] sm:$0xff]
    %v79 = vld [vmem:[%s0 + $0xf0] sm:$0xff]
    %v80 = vld [vmem:[%s0 + $0xf8] sm:$0xff]
    %v81 = vld [vmem:[%s2] sm:$0xff]
    %v82 = vld [vmem:[%s2 + $0x8] sm:$0xff]
    %v83 = vld [vmem:[%s2 + $0x10] sm:$0xff]
    %v84 = vld [vmem:[%s2 + $0x18] sm:$0xff]
    %v85 = vld [vmem:[%s3] sm:$0x1]
    %v87 = vlaneseq
    %v88 = vshrl.u32 %v87, 7
    %v89 = vsub.s32 0, %v88
    %v90 = vrot.slane %v85, %v89
    %vm92 = vcmask 261120
    %v94 = vsel %vm92, %v49, 0
    %v97 = vsel %vm92, %v50, 0
    %v100 = vsel %vm92, %v51, 0
    %v103 = vsel %vm92, %v52, 0
    %v106 = vsel %vm92, %v53, 0
    %v109 = vsel %vm92, %v54, 0
    %v112 = vsel %vm92, %v55, 0
    %v115 = vsel %vm92, %v56, 0
    %v118 = vsel %vm92, %v57, 0
    %v121 = vsel %vm92, %v58, 0
    %v124 = vsel %vm92, %v59, 0
    %v127 = vsel %vm92, %v60, 0
    %v130 = vsel %vm92, %v61, 0
    %v133 = vsel %vm92, %v62, 0
    %v136 = vsel %vm92, %v63, 0
    %v139 = vsel %vm92, %v64, 0
    %v142 = vsel %vm92, %v65, 0
    %v145 = vsel %vm92, %v66, 0
    %v148 = vsel %vm92, %v67, 0
    %v151 = vsel %vm92, %v68, 0
    %v154 = vsel %vm92, %v69, 0
    %v157 = vsel %vm92, %v70, 0
    %v160 = vsel %vm92, %v71, 0
    %v163 = vsel %vm92, %v72, 0
    %v166 = vsel %vm92, %v73, 0
    %v169 = vsel %vm92, %v74, 0
    %v172 = vsel %vm92, %v75, 0
    %v175 = vsel %vm92, %v76, 0
    %v178 = vsel %vm92, %v77, 0
    %v181 = vsel %vm92, %v78, 0
    %v184 = vsel %vm92, %v79, 0
    %v187 = vsel %vm92, %v80, 0
    %189 = vmatprep.subr.mxu0 0.0
    %190 = vmatpush1.msra.mxu0 0.0
    %191 = vmatprep.subr.mxu0 0.0
    %192 = vmatpush1.msra.mxu0 0.0
    %193 = vmatprep.subr.mxu0 0.0
    %194 = vmatpush1.msra.mxu0 0.0
    %195 = vmatprep.subr.mxu0 0.0
    %196 = vmatpush1.msra.mxu0 0.0
    %197 = vmatprep.subr.mxu0 0.0
    %198 = vmatpush1.msra.mxu0 0.0
    %199 = vmatprep.subr.mxu0 0.0
    %200 = vmatpush1.msra.mxu0 0.0
    %201 = vmatprep.subr.mxu0 0.0
    %202 = vmatpush1.msra.mxu0 0.0
    %203 = vmatprep.subr.mxu0 0.0
    %204 = vmatpush1.msra.mxu0 0.0
    %205 = vmatprep.subr.mxu0 0.0
    %206 = vmatpush1.msra.mxu0 0.0
    %207 = vmatprep.subr.mxu0 0.0
    %208 = vmatpush1.msra.mxu0 0.0
    %209 = vmatprep.subr.mxu0 0.0
    %210 = vmatpush1.msra.mxu0 0.0
    %211 = vmatprep.subr.mxu0 0.0
    %212 = vmatpush1.msra.mxu0 0.0
    %213 = vmatprep.subr.mxu0 0.0
    %214 = vmatpush1.msra.mxu0 %v84
    %215 = vmatprep.subr.mxu0 0.0
    %216 = vmatpush1.msra.mxu0 %v83
    %217 = vmatprep.subr.mxu0 0.0
    %218 = vmatpush1.msra.mxu0 %v82
    %219 = vmatprep.subr.mxu0 0.0
    %220 = vmatpush1.msra.mxu0 %v81
    %221 = vmatprep.subr.mxu0 0.0
    %222 = vmatpush2.msra.mxu0 0.0
    %223 = vmatprep.subr.mxu0 0.0
    %224 = vmatpush2.msra.mxu0 0.0
    %225 = vmatprep.subr.mxu0 0.0
    %226 = vmatpush2.msra.mxu0 0.0
    %227 = vmatprep.subr.mxu0 0.0
    %228 = vmatpush2.msra.mxu0 0.0
    %229 = vmatprep.subr.mxu0 0.0
    %230 = vmatpush2.msra.mxu0 0.0
    %231 = vmatprep.subr.mxu0 0.0
    %232 = vmatpush2.msra.mxu0 0.0
    %233 = vmatprep.subr.mxu0 0.0
    %234 = vmatpush2.msra.mxu0 0.0
    %235 = vmatprep.subr.mxu0 0.0
    %236 = vmatpush2.msra.mxu0 0.0
    %237 = vmatprep.subr.mxu0 0.0
    %238 = vmatpush2.msra.mxu0 0.0
    %239 = vmatprep.subr.mxu0 0.0
    %240 = vmatpush2.msra.mxu0 0.0
    %241 = vmatprep.subr.mxu0 0.0
    %242 = vmatpush2.msra.mxu0 0.0
    %243 = vmatprep.subr.mxu0 0.0
    %244 = vmatpush2.msra.mxu0 0.0
    %245 = vmatprep.subr.mxu0 0.0
    %246 = vmatpush2.msra.mxu0 0.0
    %247 = vmatprep.subr.mxu0 0.0
    %248 = vmatpush2.msra.mxu0 0.0
    %249 = vmatprep.subr.mxu0 0.0
    %250 = vmatpush2.msra.mxu0 0.0
    %251 = vmatprep.subr.mxu0 0.0
    %252 = vmatpush2.msra.mxu0 0.0
    %253 = vmatprep.mubr.f32.mxu0 0.0
    %254 = vmatmul.mubr.f32.gmra.mxu0 %v94
    %v255 = vpop.f32.mrf.mxu0
    %v256 = vadd.f32 %v90, %v255
    %v257 = vpop.f32.mrf.mxu0
    %258 = vmatprep.mubr.f32.mxu0 0.0
    %259 = vmatmul.mubr.f32.gmra.mxu0 %v97
    %v260 = vpop.f32.mrf.mxu0
    %v261 = vadd.f32 %v90, %v260
    %v262 = vpop.f32.mrf.mxu0
    %263 = vmatprep.mubr.f32.mxu0 0.0
    %264 = vmatmul.mubr.f32.gmra.mxu0 %v100
    %v265 = vpop.f32.mrf.mxu0
    %v266 = vadd.f32 %v90, %v265
    %v267 = vpop.f32.mrf.mxu0
    %268 = vmatprep.mubr.f32.mxu0 0.0
    %269 = vmatmul.mubr.f32.gmra.mxu0 %v103
    %v270 = vpop.f32.mrf.mxu0
    %v271 = vadd.f32 %v90, %v270
    %v272 = vpop.f32.mrf.mxu0
    %273 = vmatprep.mubr.f32.mxu0 0.0
    %274 = vmatmul.mubr.f32.gmra.mxu0 %v106
    %v275 = vpop.f32.mrf.mxu0
    %v276 = vadd.f32 %v90, %v275
    %v277 = vpop.f32.mrf.mxu0
    %278 = vmatprep.mubr.f32.mxu0 0.0
    %279 = vmatmul.mubr.f32.gmra.mxu0 %v109
    %v280 = vpop.f32.mrf.mxu0
    %v281 = vadd.f32 %v90, %v280
    %v282 = vpop.f32.mrf.mxu0
    %283 = vmatprep.mubr.f32.mxu0 0.0
    %284 = vmatmul.mubr.f32.gmra.mxu0 %v112
    %v285 = vpop.f32.mrf.mxu0
    %v286 = vadd.f32 %v90, %v285
    %v287 = vpop.f32.mrf.mxu0
    %288 = vmatprep.mubr.f32.mxu0 0.0
    %289 = vmatmul.mubr.f32.gmra.mxu0 %v115
    %v290 = vpop.f32.mrf.mxu0
    %v291 = vadd.f32 %v90, %v290
    %v292 = vpop.f32.mrf.mxu0
    %293 = vmatprep.mubr.f32.mxu0 0.0
    %294 = vmatmul.mubr.f32.gmra.mxu0 %v118
    %v295 = vpop.f32.mrf.mxu0
    %v296 = vadd.f32 %v90, %v295
    %v297 = vpop.f32.mrf.mxu0
    %298 = vmatprep.mubr.f32.mxu0 0.0
    %299 = vmatmul.mubr.f32.gmra.mxu0 %v121
    %v300 = vpop.f32.mrf.mxu0
    %v301 = vadd.f32 %v90, %v300
    %v302 = vpop.f32.mrf.mxu0
    %303 = vmatprep.mubr.f32.mxu0 0.0
    %304 = vmatmul.mubr.f32.gmra.mxu0 %v124
    %v305 = vpop.f32.mrf.mxu0
    %v306 = vadd.f32 %v90, %v305
    %v307 = vpop.f32.mrf.mxu0
    %308 = vmatprep.mubr.f32.mxu0 0.0
    %309 = vmatmul.mubr.f32.gmra.mxu0 %v127
    %v310 = vpop.f32.mrf.mxu0
    %v311 = vadd.f32 %v90, %v310
    %v312 = vpop.f32.mrf.mxu0
    %313 = vmatprep.mubr.f32.mxu0 0.0
    %314 = vmatmul.mubr.f32.gmra.mxu0 %v130
    %v315 = vpop.f32.mrf.mxu0
    %v316 = vadd.f32 %v90, %v315
    %v317 = vpop.f32.mrf.mxu0
    %318 = vmatprep.mubr.f32.mxu0 0.0
    %319 = vmatmul.mubr.f32.gmra.mxu0 %v133
    %v320 = vpop.f32.mrf.mxu0
    %v321 = vadd.f32 %v90, %v320
    %v322 = vpop.f32.mrf.mxu0
    %323 = vmatprep.mubr.f32.mxu0 0.0
    %324 = vmatmul.mubr.f32.gmra.mxu0 %v136
    %v325 = vpop.f32.mrf.mxu0
    %v326 = vadd.f32 %v90, %v325
    %v327 = vpop.f32.mrf.mxu0
    %328 = vmatprep.mubr.f32.mxu0 0.0
    %329 = vmatmul.mubr.f32.gmra.mxu0 %v139
    %v330 = vpop.f32.mrf.mxu0
    %v331 = vadd.f32 %v90, %v330
    %v332 = vpop.f32.mrf.mxu0
    %333 = vmatprep.mubr.f32.mxu0 0.0
    %334 = vmatmul.mubr.f32.gmra.mxu0 %v142
    %v335 = vpop.f32.mrf.mxu0
    %v336 = vadd.f32 %v90, %v335
    %v337 = vpop.f32.mrf.mxu0
    %338 = vmatprep.mubr.f32.mxu0 0.0
    %339 = vmatmul.mubr.f32.gmra.mxu0 %v145
    %v340 = vpop.f32.mrf.mxu0
    %v341 = vadd.f32 %v90, %v340
    %v342 = vpop.f32.mrf.mxu0
    %343 = vmatprep.mubr.f32.mxu0 0.0
    %344 = vmatmul.mubr.f32.gmra.mxu0 %v148
    %v345 = vpop.f32.mrf.mxu0
    %v346 = vadd.f32 %v90, %v345
    %v347 = vpop.f32.mrf.mxu0
    %348 = vmatprep.mubr.f32.mxu0 0.0
    %349 = vmatmul.mubr.f32.gmra.mxu0 %v151
    %v350 = vpop.f32.mrf.mxu0
    %v351 = vadd.f32 %v90, %v350
    %v352 = vpop.f32.mrf.mxu0
    %353 = vmatprep.mubr.f32.mxu0 0.0
    %354 = vmatmul.mubr.f32.gmra.mxu0 %v154
    %v355 = vpop.f32.mrf.mxu0
    %v356 = vadd.f32 %v90, %v355
    %v357 = vpop.f32.mrf.mxu0
    %358 = vmatprep.mubr.f32.mxu0 0.0
    %359 = vmatmul.mubr.f32.gmra.mxu0 %v157
    %v360 = vpop.f32.mrf.mxu0
    %v361 = vadd.f32 %v90, %v360
    %v362 = vpop.f32.mrf.mxu0
    %363 = vmatprep.mubr.f32.mxu0 0.0
    %364 = vmatmul.mubr.f32.gmra.mxu0 %v160
    %v365 = vpop.f32.mrf.mxu0
    %v366 = vadd.f32 %v90, %v365
    %v367 = vpop.f32.mrf.mxu0
    %368 = vmatprep.mubr.f32.mxu0 0.0
    %369 = vmatmul.mubr.f32.gmra.mxu0 %v163
    %v370 = vpop.f32.mrf.mxu0
    %v371 = vadd.f32 %v90, %v370
    %v372 = vpop.f32.mrf.mxu0
    %373 = vmatprep.mubr.f32.mxu0 0.0
    %374 = vmatmul.mubr.f32.gmra.mxu0 %v166
    %v375 = vpop.f32.mrf.mxu0
    %v376 = vadd.f32 %v90, %v375
    %v377 = vpop.f32.mrf.mxu0
    %378 = vmatprep.mubr.f32.mxu0 0.0
    %379 = vmatmul.mubr.f32.gmra.mxu0 %v169
    %v380 = vpop.f32.mrf.mxu0
    %v381 = vadd.f32 %v90, %v380
    %v382 = vpop.f32.mrf.mxu0
    %383 = vmatprep.mubr.f32.mxu0 0.0
    %384 = vmatmul.mubr.f32.gmra.mxu0 %v172
    %v385 = vpop.f32.mrf.mxu0
    %v386 = vadd.f32 %v90, %v385
    %v387 = vpop.f32.mrf.mxu0
    %388 = vmatprep.mubr.f32.mxu0 0.0
    %389 = vmatmul.mubr.f32.gmra.mxu0 %v175
    %v390 = vpop.f32.mrf.mxu0
    %v391 = vadd.f32 %v90, %v390
    %v392 = vpop.f32.mrf.mxu0
    %393 = vmatprep.mubr.f32.mxu0 0.0
    %394 = vmatmul.mubr.f32.gmra.mxu0 %v178
    %v395 = vpop.f32.mrf.mxu0
    %v396 = vadd.f32 %v90, %v395
    %v397 = vpop.f32.mrf.mxu0
    %398 = vmatprep.mubr.f32.mxu0 0.0
    %399 = vmatmul.mubr.f32.gmra.mxu0 %v181
    %v400 = vpop.f32.mrf.mxu0
    %v401 = vadd.f32 %v90, %v400
    %v402 = vpop.f32.mrf.mxu0
    %403 = vmatprep.mubr.f32.mxu0 0.0
    %404 = vmatmul.mubr.f32.gmra.mxu0 %v184
    %v405 = vpop.f32.mrf.mxu0
    %v406 = vadd.f32 %v90, %v405
    %v407 = vpop.f32.mrf.mxu0
    %408 = vmatprep.mubr.f32.mxu0 0.0
    %409 = vmatmul.mubr.f32.gmra.mxu0 %v187
    %v410 = vpop.f32.mrf.mxu0
    %v411 = vadd.f32 %v90, %v410
    %v412 = vpop.f32.mrf.mxu0
    %413 = vdwg.mxu0
    %v414 = vmax.f32 %v256, 0.0
    %v415 = vmax.f32 %v261, 0.0
    %v416 = vmax.f32 %v266, 0.0
    %v417 = vmax.f32 %v271, 0.0
    %v418 = vmax.f32 %v276, 0.0
    %v419 = vmax.f32 %v281, 0.0
    %v420 = vmax.f32 %v286, 0.0
    %v421 = vmax.f32 %v291, 0.0
    %v422 = vmax.f32 %v296, 0.0
    %v423 = vmax.f32 %v301, 0.0
    %v424 = vmax.f32 %v306, 0.0
    %v425 = vmax.f32 %v311, 0.0
    %v426 = vmax.f32 %v316, 0.0
    %v427 = vmax.f32 %v321, 0.0
    %v428 = vmax.f32 %v326, 0.0
    %v429 = vmax.f32 %v331, 0.0
    %v430 = vmax.f32 %v336, 0.0
    %v431 = vmax.f32 %v341, 0.0
    %v432 = vmax.f32 %v346, 0.0
    %v433 = vmax.f32 %v351, 0.0
    %v434 = vmax.f32 %v356, 0.0
    %v435 = vmax.f32 %v361, 0.0
    %v436 = vmax.f32 %v366, 0.0
    %v437 = vmax.f32 %v371, 0.0
    %v438 = vmax.f32 %v376, 0.0
    %v439 = vmax.f32 %v381, 0.0
    %v440 = vmax.f32 %v386, 0.0
    %v441 = vmax.f32 %v391, 0.0
    %v442 = vmax.f32 %v396, 0.0
    %v443 = vmax.f32 %v401, 0.0
    %v444 = vmax.f32 %v406, 0.0
    %v445 = vmax.f32 %v411, 0.0
    %v446 = vld [vmem:[%s4] sm:$0xff]
    %v447 = vld [vmem:[%s4 + $0x8] sm:$0xff]
    %v448 = vld [vmem:[%s4 + $0x10] sm:$0xff]
    %v449 = vld [vmem:[%s4 + $0x18] sm:$0xff]
    %v450 = vld [vmem:[%s4 + $0x20] sm:$0xff]
    %v451 = vld [vmem:[%s4 + $0x28] sm:$0xff]
    %v452 = vld [vmem:[%s4 + $0x30] sm:$0xff]
    %v453 = vld [vmem:[%s4 + $0x38] sm:$0xff]
    %v454 = vld [vmem:[%s5] sm:$0x3]
    %v456 = vlaneseq
    %v457 = vshrl.u32 %v456, 7
    %v458 = vsub.s32 0, %v457
    %v459 = vrot.slane %v454, %v458
    %v460 = vlaneseq
    %v461 = vshrl.u32 %v460, 7
    %v462 = vsub.s32 1, %v461
    %v463 = vrot.slane %v454, %v462
    %v467 = vsel %vm92, %v414, 0
    %v470 = vsel %vm92, %v415, 0
    %v473 = vsel %vm92, %v416, 0
    %v476 = vsel %vm92, %v417, 0
    %v479 = vsel %vm92, %v418, 0
    %v482 = vsel %vm92, %v419, 0
    %v485 = vsel %vm92, %v420, 0
    %v488 = vsel %vm92, %v421, 0
    %v491 = vsel %vm92, %v422, 0
    %v494 = vsel %vm92, %v423, 0
    %v497 = vsel %vm92, %v424, 0
    %v500 = vsel %vm92, %v425, 0
    %v503 = vsel %vm92, %v426, 0
    %v506 = vsel %vm92, %v427, 0
    %v509 = vsel %vm92, %v428, 0
    %v512 = vsel %vm92, %v429, 0
    %v515 = vsel %vm92, %v430, 0
    %v518 = vsel %vm92, %v431, 0
    %v521 = vsel %vm92, %v432, 0
    %v524 = vsel %vm92, %v433, 0
    %v527 = vsel %vm92, %v434, 0
    %v530 = vsel %vm92, %v435, 0
    %v533 = vsel %vm92, %v436, 0
    %v536 = vsel %vm92, %v437, 0
    %v539 = vsel %vm92, %v438, 0
    %v542 = vsel %vm92, %v439, 0
    %v545 = vsel %vm92, %v440, 0
    %v548 = vsel %vm92, %v441, 0
    %v551 = vsel %vm92, %v442, 0
    %v554 = vsel %vm92, %v443, 0
    %v557 = vsel %vm92, %v444, 0
    %v560 = vsel %vm92, %v445, 0
    %562 = vmatprep.subr.mxu0 0.0
    %563 = vmatpush1.msra.mxu0 0.0
    %564 = vmatprep.subr.mxu0 0.0
    %565 = vmatpush1.msra.mxu0 0.0
    %566 = vmatprep.subr.mxu0 0.0
    %567 = vmatpush1.msra.mxu0 0.0
    %568 = vmatprep.subr.mxu0 0.0
    %569 = vmatpush1.msra.mxu0 0.0
    %570 = vmatprep.subr.mxu0 0.0
    %571 = vmatpush1.msra.mxu0 0.0
    %572 = vmatprep.subr.mxu0 0.0
    %573 = vmatpush1.msra.mxu0 0.0
    %574 = vmatprep.subr.mxu0 0.0
    %575 = vmatpush1.msra.mxu0 0.0
    %576 = vmatprep.subr.mxu0 0.0
    %577 = vmatpush1.msra.mxu0 0.0
    %578 = vmatprep.subr.mxu0 0.0
    %579 = vmatpush1.msra.mxu0 0.0
    %580 = vmatprep.subr.mxu0 0.0
    %581 = vmatpush1.msra.mxu0 0.0
    %582 = vmatprep.subr.mxu0 0.0
    %583 = vmatpush1.msra.mxu0 0.0
    %584 = vmatprep.subr.mxu0 0.0
    %585 = vmatpush1.msra.mxu0 0.0
    %586 = vmatprep.subr.mxu0 %v453
    %587 = vmatpush1.msra.mxu0 %v452
    %588 = vmatprep.subr.mxu0 %v451
    %589 = vmatpush1.msra.mxu0 %v450
    %590 = vmatprep.subr.mxu0 %v449
    %591 = vmatpush1.msra.mxu0 %v448
    %592 = vmatprep.subr.mxu0 %v447
    %593 = vmatpush1.msra.mxu0 %v446
    %594 = vmatprep.subr.mxu0 0.0
    %595 = vmatpush2.msra.mxu0 0.0
    %596 = vmatprep.subr.mxu0 0.0
    %597 = vmatpush2.msra.mxu0 0.0
    %598 = vmatprep.subr.mxu0 0.0
    %599 = vmatpush2.msra.mxu0 0.0
    %600 = vmatprep.subr.mxu0 0.0
    %601 = vmatpush2.msra.mxu0 0.0
    %602 = vmatprep.subr.mxu0 0.0
    %603 = vmatpush2.msra.mxu0 0.0
    %604 = vmatprep.subr.mxu0 0.0
    %605 = vmatpush2.msra.mxu0 0.0
    %606 = vmatprep.subr.mxu0 0.0
    %607 = vmatpush2.msra.mxu0 0.0
    %608 = vmatprep.subr.mxu0 0.0
    %609 = vmatpush2.msra.mxu0 0.0
    %610 = vmatprep.subr.mxu0 0.0
    %611 = vmatpush2.msra.mxu0 0.0
    %612 = vmatprep.subr.mxu0 0.0
    %613 = vmatpush2.msra.mxu0 0.0
    %614 = vmatprep.subr.mxu0 0.0
    %615 = vmatpush2.msra.mxu0 0.0
    %616 = vmatprep.subr.mxu0 0.0
    %617 = vmatpush2.msra.mxu0 0.0
    %618 = vmatprep.subr.mxu0 0.0
    %619 = vmatpush2.msra.mxu0 0.0
    %620 = vmatprep.subr.mxu0 0.0
    %621 = vmatpush2.msra.mxu0 0.0
    %622 = vmatprep.subr.mxu0 0.0
    %623 = vmatpush2.msra.mxu0 0.0
    %624 = vmatprep.subr.mxu0 0.0
    %625 = vmatpush2.msra.mxu0 0.0
    %626 = vmatprep.mubr.f32.mxu0 0.0
    %627 = vmatmul.mubr.f32.gmra.mxu0 %v467
    %v628 = vpop.f32.mrf.mxu0
    %v629 = vadd.f32 %v459, %v628
    %v630 = vpop.f32.mrf.mxu0
    %v631 = vadd.f32 %v463, %v630
    %632 = vmatprep.mubr.f32.mxu0 0.0
    %633 = vmatmul.mubr.f32.gmra.mxu0 %v470
    %v634 = vpop.f32.mrf.mxu0
    %v635 = vadd.f32 %v459, %v634
    %v636 = vpop.f32.mrf.mxu0
    %v637 = vadd.f32 %v463, %v636
    %638 = vmatprep.mubr.f32.mxu0 0.0
    %639 = vmatmul.mubr.f32.gmra.mxu0 %v473
    %v640 = vpop.f32.mrf.mxu0
    %v641 = vadd.f32 %v459, %v640
    %v642 = vpop.f32.mrf.mxu0
    %v643 = vadd.f32 %v463, %v642
    %644 = vmatprep.mubr.f32.mxu0 0.0
    %645 = vmatmul.mubr.f32.gmra.mxu0 %v476
    %v646 = vpop.f32.mrf.mxu0
    %v647 = vadd.f32 %v459, %v646
    %v648 = vpop.f32.mrf.mxu0
    %v649 = vadd.f32 %v463, %v648
    %650 = vmatprep.mubr.f32.mxu0 0.0
    %651 = vmatmul.mubr.f32.gmra.mxu0 %v479
    %v652 = vpop.f32.mrf.mxu0
    %v653 = vadd.f32 %v459, %v652
    %v654 = vpop.f32.mrf.mxu0
    %v655 = vadd.f32 %v463, %v654
    %656 = vmatprep.mubr.f32.mxu0 0.0
    %657 = vmatmul.mubr.f32.gmra.mxu0 %v482
    %v658 = vpop.f32.mrf.mxu0
    %v659 = vadd.f32 %v459, %v658
    %v660 = vpop.f32.mrf.mxu0
    %v661 = vadd.f32 %v463, %v660
    %662 = vmatprep.mubr.f32.mxu0 0.0
    %663 = vmatmul.mubr.f32.gmra.mxu0 %v485
    %v664 = vpop.f32.mrf.mxu0
    %v665 = vadd.f32 %v459, %v664
    %v666 = vpop.f32.mrf.mxu0
    %v667 = vadd.f32 %v463, %v666
    %668 = vmatprep.mubr.f32.mxu0 0.0
    %669 = vmatmul.mubr.f32.gmra.mxu0 %v488
    %v670 = vpop.f32.mrf.mxu0
    %v671 = vadd.f32 %v459, %v670
    %v672 = vpop.f32.mrf.mxu0
    %v673 = vadd.f32 %v463, %v672
    %674 = vmatprep.mubr.f32.mxu0 0.0
    %675 = vmatmul.mubr.f32.gmra.mxu0 %v491
    %v676 = vpop.f32.mrf.mxu0
    %v677 = vadd.f32 %v459, %v676
    %v678 = vpop.f32.mrf.mxu0
    %v679 = vadd.f32 %v463, %v678
    %680 = vmatprep.mubr.f32.mxu0 0.0
    %681 = vmatmul.mubr.f32.gmra.mxu0 %v494
    %v682 = vpop.f32.mrf.mxu0
    %v683 = vadd.f32 %v459, %v682
    %v684 = vpop.f32.mrf.mxu0
    %v685 = vadd.f32 %v463, %v684
    %686 = vmatprep.mubr.f32.mxu0 0.0
    %687 = vmatmul.mubr.f32.gmra.mxu0 %v497
    %v688 = vpop.f32.mrf.mxu0
    %v689 = vadd.f32 %v459, %v688
    %v690 = vpop.f32.mrf.mxu0
    %v691 = vadd.f32 %v463, %v690
    %692 = vmatprep.mubr.f32.mxu0 0.0
    %693 = vmatmul.mubr.f32.gmra.mxu0 %v500
    %v694 = vpop.f32.mrf.mxu0
    %v695 = vadd.f32 %v459, %v694
    %v696 = vpop.f32.mrf.mxu0
    %v697 = vadd.f32 %v463, %v696
    %698 = vmatprep.mubr.f32.mxu0 0.0
    %699 = vmatmul.mubr.f32.gmra.mxu0 %v503
    %v700 = vpop.f32.mrf.mxu0
    %v701 = vadd.f32 %v459, %v700
    %v702 = vpop.f32.mrf.mxu0
    %v703 = vadd.f32 %v463, %v702
    %704 = vmatprep.mubr.f32.mxu0 0.0
    %705 = vmatmul.mubr.f32.gmra.mxu0 %v506
    %v706 = vpop.f32.mrf.mxu0
    %v707 = vadd.f32 %v459, %v706
    %v708 = vpop.f32.mrf.mxu0
    %v709 = vadd.f32 %v463, %v708
    %710 = vmatprep.mubr.f32.mxu0 0.0
    %711 = vmatmul.mubr.f32.gmra.mxu0 %v509
    %v712 = vpop.f32.mrf.mxu0
    %v713 = vadd.f32 %v459, %v712
    %v714 = vpop.f32.mrf.mxu0
    %v715 = vadd.f32 %v463, %v714
    %716 = vmatprep.mubr.f32.mxu0 0.0
    %717 = vmatmul.mubr.f32.gmra.mxu0 %v512
    %v718 = vpop.f32.mrf.mxu0
    %v719 = vadd.f32 %v459, %v718
    %v720 = vpop.f32.mrf.mxu0
    %v721 = vadd.f32 %v463, %v720
    %722 = vmatprep.mubr.f32.mxu0 0.0
    %723 = vmatmul.mubr.f32.gmra.mxu0 %v515
    %v724 = vpop.f32.mrf.mxu0
    %v725 = vadd.f32 %v459, %v724
    %v726 = vpop.f32.mrf.mxu0
    %v727 = vadd.f32 %v463, %v726
    %728 = vmatprep.mubr.f32.mxu0 0.0
    %729 = vmatmul.mubr.f32.gmra.mxu0 %v518
    %v730 = vpop.f32.mrf.mxu0
    %v731 = vadd.f32 %v459, %v730
    %v732 = vpop.f32.mrf.mxu0
    %v733 = vadd.f32 %v463, %v732
    %734 = vmatprep.mubr.f32.mxu0 0.0
    %735 = vmatmul.mubr.f32.gmra.mxu0 %v521
    %v736 = vpop.f32.mrf.mxu0
    %v737 = vadd.f32 %v459, %v736
    %v738 = vpop.f32.mrf.mxu0
    %v739 = vadd.f32 %v463, %v738
    %740 = vmatprep.mubr.f32.mxu0 0.0
    %741 = vmatmul.mubr.f32.gmra.mxu0 %v524
    %v742 = vpop.f32.mrf.mxu0
    %v743 = vadd.f32 %v459, %v742
    %v744 = vpop.f32.mrf.mxu0
    %v745 = vadd.f32 %v463, %v744
    %746 = vmatprep.mubr.f32.mxu0 0.0
    %747 = vmatmul.mubr.f32.gmra.mxu0 %v527
    %v748 = vpop.f32.mrf.mxu0
    %v749 = vadd.f32 %v459, %v748
    %v750 = vpop.f32.mrf.mxu0
    %v751 = vadd.f32 %v463, %v750
    %752 = vmatprep.mubr.f32.mxu0 0.0
    %753 = vmatmul.mubr.f32.gmra.mxu0 %v530
    %v754 = vpop.f32.mrf.mxu0
    %v755 = vadd.f32 %v459, %v754
    %v756 = vpop.f32.mrf.mxu0
    %v757 = vadd.f32 %v463, %v756
    %758 = vmatprep.mubr.f32.mxu0 0.0
    %759 = vmatmul.mubr.f32.gmra.mxu0 %v533
    %v760 = vpop.f32.mrf.mxu0
    %v761 = vadd.f32 %v459, %v760
    %v762 = vpop.f32.mrf.mxu0
    %v763 = vadd.f32 %v463, %v762
    %764 = vmatprep.mubr.f32.mxu0 0.0
    %765 = vmatmul.mubr.f32.gmra.mxu0 %v536
    %v766 = vpop.f32.mrf.mxu0
    %v767 = vadd.f32 %v459, %v766
    %v768 = vpop.f32.mrf.mxu0
    %v769 = vadd.f32 %v463, %v768
    %770 = vmatprep.mubr.f32.mxu0 0.0
    %771 = vmatmul.mubr.f32.gmra.mxu0 %v539
    %v772 = vpop.f32.mrf.mxu0
    %v773 = vadd.f32 %v459, %v772
    %v774 = vpop.f32.mrf.mxu0
    %v775 = vadd.f32 %v463, %v774
    %776 = vmatprep.mubr.f32.mxu0 0.0
    %777 = vmatmul.mubr.f32.gmra.mxu0 %v542
    %v778 = vpop.f32.mrf.mxu0
    %v779 = vadd.f32 %v459, %v778
    %v780 = vpop.f32.mrf.mxu0
    %v781 = vadd.f32 %v463, %v780
    %782 = vmatprep.mubr.f32.mxu0 0.0
    %783 = vmatmul.mubr.f32.gmra.mxu0 %v545
    %v784 = vpop.f32.mrf.mxu0
    %v785 = vadd.f32 %v459, %v784
    %v786 = vpop.f32.mrf.mxu0
    %v787 = vadd.f32 %v463, %v786
    %788 = vmatprep.mubr.f32.mxu0 0.0
    %789 = vmatmul.mubr.f32.gmra.mxu0 %v548
    %v790 = vpop.f32.mrf.mxu0
    %v791 = vadd.f32 %v459, %v790
    %v792 = vpop.f32.mrf.mxu0
    %v793 = vadd.f32 %v463, %v792
    %794 = vmatprep.mubr.f32.mxu0 0.0
    %795 = vmatmul.mubr.f32.gmra.mxu0 %v551
    %v796 = vpop.f32.mrf.mxu0
    %v797 = vadd.f32 %v459, %v796
    %v798 = vpop.f32.mrf.mxu0
    %v799 = vadd.f32 %v463, %v798
    %800 = vmatprep.mubr.f32.mxu0 0.0
    %801 = vmatmul.mubr.f32.gmra.mxu0 %v554
    %v802 = vpop.f32.mrf.mxu0
    %v803 = vadd.f32 %v459, %v802
    %v804 = vpop.f32.mrf.mxu0
    %v805 = vadd.f32 %v463, %v804
    %806 = vmatprep.mubr.f32.mxu0 0.0
    %807 = vmatmul.mubr.f32.gmra.mxu0 %v557
    %v808 = vpop.f32.mrf.mxu0
    %v809 = vadd.f32 %v459, %v808
    %v810 = vpop.f32.mrf.mxu0
    %v811 = vadd.f32 %v463, %v810
    %812 = vmatprep.mubr.f32.mxu0 0.0
    %813 = vmatmul.mubr.f32.gmra.mxu0 %v560
    %v814 = vpop.f32.mrf.mxu0
    %v815 = vadd.f32 %v459, %v814
    %v816 = vpop.f32.mrf.mxu0
    %v817 = vadd.f32 %v463, %v816
    %818 = vdwg.mxu0
    %v819 = vmax.f32 %v629, 0.0
    %v820 = vmax.f32 %v631, 0.0
    %v821 = vmax.f32 %v635, 0.0
    %v822 = vmax.f32 %v637, 0.0
    %v823 = vmax.f32 %v641, 0.0
    %v824 = vmax.f32 %v643, 0.0
    %v825 = vmax.f32 %v647, 0.0
    %v826 = vmax.f32 %v649, 0.0
    %v827 = vmax.f32 %v653, 0.0
    %v828 = vmax.f32 %v655, 0.0
    %v829 = vmax.f32 %v659, 0.0
    %v830 = vmax.f32 %v661, 0.0
    %v831 = vmax.f32 %v665, 0.0
    %v832 = vmax.f32 %v667, 0.0
    %v833 = vmax.f32 %v671, 0.0
    %v834 = vmax.f32 %v673, 0.0
    %v835 = vmax.f32 %v677, 0.0
    %v836 = vmax.f32 %v679, 0.0
    %v837 = vmax.f32 %v683, 0.0
    %v838 = vmax.f32 %v685, 0.0
    %v839 = vmax.f32 %v689, 0.0
    %v840 = vmax.f32 %v691, 0.0
    %v841 = vmax.f32 %v695, 0.0
    %v842 = vmax.f32 %v697, 0.0
    %v843 = vmax.f32 %v701, 0.0
    %v844 = vmax.f32 %v703, 0.0
    %v845 = vmax.f32 %v707, 0.0
    %v846 = vmax.f32 %v709, 0.0
    %v847 = vmax.f32 %v713, 0.0
    %v848 = vmax.f32 %v715, 0.0
    %v849 = vmax.f32 %v719, 0.0
    %v850 = vmax.f32 %v721, 0.0
    %v851 = vmax.f32 %v725, 0.0
    %v852 = vmax.f32 %v727, 0.0
    %v853 = vmax.f32 %v731, 0.0
    %v854 = vmax.f32 %v733, 0.0
    %v855 = vmax.f32 %v737, 0.0
    %v856 = vmax.f32 %v739, 0.0
    %v857 = vmax.f32 %v743, 0.0
    %v858 = vmax.f32 %v745, 0.0
    %v859 = vmax.f32 %v749, 0.0
    %v860 = vmax.f32 %v751, 0.0
    %v861 = vmax.f32 %v755, 0.0
    %v862 = vmax.f32 %v757, 0.0
    %v863 = vmax.f32 %v761, 0.0
    %v864 = vmax.f32 %v763, 0.0
    %v865 = vmax.f32 %v767, 0.0
    %v866 = vmax.f32 %v769, 0.0
    %v867 = vmax.f32 %v773, 0.0
    %v868 = vmax.f32 %v775, 0.0
    %v869 = vmax.f32 %v779, 0.0
    %v870 = vmax.f32 %v781, 0.0
    %v871 = vmax.f32 %v785, 0.0
    %v872 = vmax.f32 %v787, 0.0
    %v873 = vmax.f32 %v791, 0.0
    %v874 = vmax.f32 %v793, 0.0
    %v875 = vmax.f32 %v797, 0.0
    %v876 = vmax.f32 %v799, 0.0
    %v877 = vmax.f32 %v803, 0.0
    %v878 = vmax.f32 %v805, 0.0
    %v879 = vmax.f32 %v809, 0.0
    %v880 = vmax.f32 %v811, 0.0
    %v881 = vmax.f32 %v815, 0.0
    %v882 = vmax.f32 %v817, 0.0
    %v883 = vpack.c.bf16 %v821, %v819
    %v884 = vpack.c.bf16 %v822, %v820
    %v885 = vpack.c.bf16 %v825, %v823
    %v886 = vpack.c.bf16 %v826, %v824
    %v887 = vpack.c.bf16 %v829, %v827
    %v888 = vpack.c.bf16 %v830, %v828
    %v889 = vpack.c.bf16 %v833, %v831
    %v890 = vpack.c.bf16 %v834, %v832
    %v891 = vpack.c.bf16 %v837, %v835
    %v892 = vpack.c.bf16 %v838, %v836
    %v893 = vpack.c.bf16 %v841, %v839
    %v894 = vpack.c.bf16 %v842, %v840
    %v895 = vpack.c.bf16 %v845, %v843
    %v896 = vpack.c.bf16 %v846, %v844
    %v897 = vpack.c.bf16 %v849, %v847
    %v898 = vpack.c.bf16 %v850, %v848
    %v899 = vpack.c.bf16 %v853, %v851
    %v900 = vpack.c.bf16 %v854, %v852
    %v901 = vpack.c.bf16 %v857, %v855
    %v902 = vpack.c.bf16 %v858, %v856
    %v903 = vpack.c.bf16 %v861, %v859
    %v904 = vpack.c.bf16 %v862, %v860
    %v905 = vpack.c.bf16 %v865, %v863
    %v906 = vpack.c.bf16 %v866, %v864
    %v907 = vpack.c.bf16 %v869, %v867
    %v908 = vpack.c.bf16 %v870, %v868
    %v909 = vpack.c.bf16 %v873, %v871
    %v910 = vpack.c.bf16 %v874, %v872
    %v911 = vpack.c.bf16 %v877, %v875
    %v912 = vpack.c.bf16 %v878, %v876
    %v913 = vpack.c.bf16 %v881, %v879
    %v914 = vpack.c.bf16 %v882, %v880
    %v915 = vld [vmem:[%s6] sm:$0xff]
    %v916 = vld [vmem:[%s6 + $0x8] sm:$0xff]
    %v917 = vld [vmem:[%s6 + $0x10] sm:$0xff]
    %v918 = vld [vmem:[%s6 + $0x18] sm:$0xff]
    %v919 = vld [vmem:[%s6 + $0x20] sm:$0xff]
    %v920 = vld [vmem:[%s6 + $0x28] sm:$0xff]
    %v921 = vld [vmem:[%s6 + $0x30] sm:$0xff]
    %v922 = vld [vmem:[%s6 + $0x38] sm:$0xff]
    %v923 = vld [vmem:[%s6 + $0x40] sm:$0xff]
    %v924 = vld [vmem:[%s6 + $0x48] sm:$0xff]
    %v925 = vld [vmem:[%s6 + $0x50] sm:$0xff]
    %v926 = vld [vmem:[%s6 + $0x58] sm:$0xff]
    %v927 = vld [vmem:[%s6 + $0x60] sm:$0xff]
    %v928 = vld [vmem:[%s6 + $0x68] sm:$0xff]
    %v929 = vld [vmem:[%s6 + $0x70] sm:$0xff]
    %v930 = vld [vmem:[%s6 + $0x78] sm:$0xff]
    %v931 = vld [vmem:[%s6 + $0x80] sm:$0xff]
    %v932 = vld [vmem:[%s6 + $0x88] sm:$0xff]
    %v933 = vld [vmem:[%s6 + $0x90] sm:$0xff]
    %v934 = vld [vmem:[%s6 + $0x98] sm:$0xff]
    %v935 = vld [vmem:[%s6 + $0xa0] sm:$0xff]
    %v936 = vld [vmem:[%s6 + $0xa8] sm:$0xff]
    %v937 = vld [vmem:[%s6 + $0xb0] sm:$0xff]
    %v938 = vld [vmem:[%s6 + $0xb8] sm:$0xff]
    %v939 = vld [vmem:[%s6 + $0xc0] sm:$0xff]
    %v940 = vld [vmem:[%s6 + $0xc8] sm:$0xff]
    %v941 = vld [vmem:[%s6 + $0xd0] sm:$0xff]
    %v942 = vld [vmem:[%s6 + $0xd8] sm:$0xff]
    %v943 = vld [vmem:[%s6 + $0xe0] sm:$0xff]
    %v944 = vld [vmem:[%s6 + $0xe8] sm:$0xff]
    %v945 = vld [vmem:[%s6 + $0xf0] sm:$0xff]
    %v946 = vld [vmem:[%s6 + $0xf8] sm:$0xff]
    %v947 = vld [vmem:[%s6 + $0x100] sm:$0xff]
    %v948 = vld [vmem:[%s6 + $0x108] sm:$0xff]
    %v949 = vld [vmem:[%s6 + $0x110] sm:$0xff]
    %v950 = vld [vmem:[%s6 + $0x118] sm:$0xff]
    %v951 = vld [vmem:[%s6 + $0x120] sm:$0xff]
    %v952 = vld [vmem:[%s6 + $0x128] sm:$0xff]
    %v953 = vld [vmem:[%s6 + $0x130] sm:$0xff]
    %v954 = vld [vmem:[%s6 + $0x138] sm:$0xff]
    %v955 = vld [vmem:[%s6 + $0x140] sm:$0xff]
    %v956 = vld [vmem:[%s6 + $0x148] sm:$0xff]
    %v957 = vld [vmem:[%s6 + $0x150] sm:$0xff]
    %v958 = vld [vmem:[%s6 + $0x158] sm:$0xff]
    %v959 = vld [vmem:[%s6 + $0x160] sm:$0xff]
    %v960 = vld [vmem:[%s6 + $0x168] sm:$0xff]
    %v961 = vld [vmem:[%s6 + $0x170] sm:$0xff]
    %v962 = vld [vmem:[%s6 + $0x178] sm:$0xff]
    %v963 = vld [vmem:[%s6 + $0x180] sm:$0xff]
    %v964 = vld [vmem:[%s6 + $0x188] sm:$0xff]
    %v965 = vld [vmem:[%s6 + $0x190] sm:$0xff]
    %v966 = vld [vmem:[%s6 + $0x198] sm:$0xff]
    %v967 = vld [vmem:[%s6 + $0x1a0] sm:$0xff]
    %v968 = vld [vmem:[%s6 + $0x1a8] sm:$0xff]
    %v969 = vld [vmem:[%s6 + $0x1b0] sm:$0xff]
    %v970 = vld [vmem:[%s6 + $0x1b8] sm:$0xff]
    %v971 = vld [vmem:[%s6 + $0x1c0] sm:$0xff]
    %v972 = vld [vmem:[%s6 + $0x1c8] sm:$0xff]
    %v973 = vld [vmem:[%s6 + $0x1d0] sm:$0xff]
    %v974 = vld [vmem:[%s6 + $0x1d8] sm:$0xff]
    %v975 = vld [vmem:[%s6 + $0x1e0] sm:$0xff]
    %v976 = vld [vmem:[%s6 + $0x1e8] sm:$0xff]
    %v977 = vld [vmem:[%s6 + $0x1f0] sm:$0xff]
    %v978 = vld [vmem:[%s6 + $0x1f8] sm:$0xff]
    %v979 = vld [vmem:[%s7] sm:$0xf]
    %v981 = vlaneseq
    %v982 = vshrl.u32 %v981, 7
    %v983 = vsub.s32 0, %v982
    %v984 = vrot.slane %v979, %v983
    %v985 = vlaneseq
    %v986 = vshrl.u32 %v985, 7
    %v987 = vsub.s32 1, %v986
    %v988 = vrot.slane %v979, %v987
    %v989 = vlaneseq
    %v990 = vshrl.u32 %v989, 7
    %v991 = vsub.s32 2, %v990
    %v992 = vrot.slane %v979, %v991
    %v993 = vlaneseq
    %v994 = vshrl.u32 %v993, 7
    %v995 = vsub.s32 3, %v994
    %v996 = vrot.slane %v979, %v995
    %v1065 = vunpack.c.l.b16 %v915
    %v1066 = vunpack.c.h.b16 %v915
    %v1067 = vunpack.c.l.b16 %v916
    %v1068 = vunpack.c.h.b16 %v916
    %v1069 = vunpack.c.l.b16 %v917
    %v1070 = vunpack.c.h.b16 %v917
    %v1071 = vunpack.c.l.b16 %v918
    %v1072 = vunpack.c.h.b16 %v918
    %v1073 = vunpack.c.l.b16 %v919
    %v1074 = vunpack.c.h.b16 %v919
    %v1075 = vunpack.c.l.b16 %v920
    %v1076 = vunpack.c.h.b16 %v920
    %v1077 = vunpack.c.l.b16 %v921
    %v1078 = vunpack.c.h.b16 %v921
    %v1079 = vunpack.c.l.b16 %v922
    %v1080 = vunpack.c.h.b16 %v922
    %v1081 = vunpack.c.l.b16 %v923
    %v1082 = vunpack.c.h.b16 %v923
    %v1083 = vunpack.c.l.b16 %v924
    %v1084 = vunpack.c.h.b16 %v924
    %v1085 = vunpack.c.l.b16 %v925
    %v1086 = vunpack.c.h.b16 %v925
    %v1087 = vunpack.c.l.b16 %v926
    %v1088 = vunpack.c.h.b16 %v926
    %v1089 = vunpack.c.l.b16 %v927
    %v1090 = vunpack.c.h.b16 %v927
    %v1091 = vunpack.c.l.b16 %v928
    %v1092 = vunpack.c.h.b16 %v928
    %v1093 = vunpack.c.l.b16 %v929
    %v1094 = vunpack.c.h.b16 %v929
    %v1095 = vunpack.c.l.b16 %v930
    %v1096 = vunpack.c.h.b16 %v930
    %v1097 = vunpack.c.l.b16 %v931
    %v1098 = vunpack.c.h.b16 %v931
    %v1099 = vunpack.c.l.b16 %v932
    %v1100 = vunpack.c.h.b16 %v932
    %v1101 = vunpack.c.l.b16 %v933
    %v1102 = vunpack.c.h.b16 %v933
    %v1103 = vunpack.c.l.b16 %v934
    %v1104 = vunpack.c.h.b16 %v934
    %v1105 = vunpack.c.l.b16 %v935
    %v1106 = vunpack.c.h.b16 %v935
    %v1107 = vunpack.c.l.b16 %v936
    %v1108 = vunpack.c.h.b16 %v936
    %v1109 = vunpack.c.l.b16 %v937
    %v1110 = vunpack.c.h.b16 %v937
    %v1111 = vunpack.c.l.b16 %v938
    %v1112 = vunpack.c.h.b16 %v938
    %v1113 = vunpack.c.l.b16 %v939
    %v1114 = vunpack.c.h.b16 %v939
    %v1115 = vunpack.c.l.b16 %v940
    %v1116 = vunpack.c.h.b16 %v940
    %v1117 = vunpack.c.l.b16 %v941
    %v1118 = vunpack.c.h.b16 %v941
    %v1119 = vunpack.c.l.b16 %v942
    %v1120 = vunpack.c.h.b16 %v942
    %v1121 = vunpack.c.l.b16 %v943
    %v1122 = vunpack.c.h.b16 %v943
    %v1123 = vunpack.c.l.b16 %v944
    %v1124 = vunpack.c.h.b16 %v944
    %v1125 = vunpack.c.l.b16 %v945
    %v1126 = vunpack.c.h.b16 %v945
    %v1127 = vunpack.c.l.b16 %v946
    %v1128 = vunpack.c.h.b16 %v946
    %v1129 = vunpack.c.l.b16 %v947
    %v1130 = vunpack.c.h.b16 %v947
    %v1131 = vunpack.c.l.b16 %v948
    %v1132 = vunpack.c.h.b16 %v948
    %v1133 = vunpack.c.l.b16 %v949
    %v1134 = vunpack.c.h.b16 %v949
    %v1135 = vunpack.c.l.b16 %v950
    %v1136 = vunpack.c.h.b16 %v950
    %v1137 = vunpack.c.l.b16 %v951
    %v1138 = vunpack.c.h.b16 %v951
    %v1139 = vunpack.c.l.b16 %v952
    %v1140 = vunpack.c.h.b16 %v952
    %v1141 = vunpack.c.l.b16 %v953
    %v1142 = vunpack.c.h.b16 %v953
    %v1143 = vunpack.c.l.b16 %v954
    %v1144 = vunpack.c.h.b16 %v954
    %v1145 = vunpack.c.l.b16 %v955
    %v1146 = vunpack.c.h.b16 %v955
    %v1147 = vunpack.c.l.b16 %v956
    %v1148 = vunpack.c.h.b16 %v956
    %v1149 = vunpack.c.l.b16 %v957
    %v1150 = vunpack.c.h.b16 %v957
    %v1151 = vunpack.c.l.b16 %v958
    %v1152 = vunpack.c.h.b16 %v958
    %v1153 = vunpack.c.l.b16 %v959
    %v1154 = vunpack.c.h.b16 %v959
    %v1155 = vunpack.c.l.b16 %v960
    %v1156 = vunpack.c.h.b16 %v960
    %v1157 = vunpack.c.l.b16 %v961
    %v1158 = vunpack.c.h.b16 %v961
    %v1159 = vunpack.c.l.b16 %v962
    %v1160 = vunpack.c.h.b16 %v962
    %v1161 = vunpack.c.l.b16 %v963
    %v1162 = vunpack.c.h.b16 %v963
    %v1163 = vunpack.c.l.b16 %v964
    %v1164 = vunpack.c.h.b16 %v964
    %v1165 = vunpack.c.l.b16 %v965
    %v1166 = vunpack.c.h.b16 %v965
    %v1167 = vunpack.c.l.b16 %v966
    %v1168 = vunpack.c.h.b16 %v966
    %v1169 = vunpack.c.l.b16 %v967
    %v1170 = vunpack.c.h.b16 %v967
    %v1171 = vunpack.c.l.b16 %v968
    %v1172 = vunpack.c.h.b16 %v968
    %v1173 = vunpack.c.l.b16 %v969
    %v1174 = vunpack.c.h.b16 %v969
    %v1175 = vunpack.c.l.b16 %v970
    %v1176 = vunpack.c.h.b16 %v970
    %v1177 = vunpack.c.l.b16 %v971
    %v1178 = vunpack.c.h.b16 %v971
    %v1179 = vunpack.c.l.b16 %v972
    %v1180 = vunpack.c.h.b16 %v972
    %v1181 = vunpack.c.l.b16 %v973
    %v1182 = vunpack.c.h.b16 %v973
    %v1183 = vunpack.c.l.b16 %v974
    %v1184 = vunpack.c.h.b16 %v974
    %v1185 = vunpack.c.l.b16 %v975
    %v1186 = vunpack.c.h.b16 %v975
    %v1187 = vunpack.c.l.b16 %v976
    %v1188 = vunpack.c.h.b16 %v976
    %v1189 = vunpack.c.l.b16 %v977
    %v1190 = vunpack.c.h.b16 %v977
    %v1191 = vunpack.c.l.b16 %v978
    %v1192 = vunpack.c.h.b16 %v978
    %v1193 = vpack.c.b16 %v1069, %v1065
    %v1194 = vpack.c.b16 %v1070, %v1066
    %v1195 = vpack.c.b16 %v1071, %v1067
    %v1196 = vpack.c.b16 %v1072, %v1068
    %v1197 = vpack.c.b16 %v1077, %v1073
    %v1198 = vpack.c.b16 %v1078, %v1074
    %v1199 = vpack.c.b16 %v1079, %v1075
    %v1200 = vpack.c.b16 %v1080, %v1076
    %v1201 = vpack.c.b16 %v1085, %v1081
    %v1202 = vpack.c.b16 %v1086, %v1082
    %v1203 = vpack.c.b16 %v1087, %v1083
    %v1204 = vpack.c.b16 %v1088, %v1084
    %v1205 = vpack.c.b16 %v1093, %v1089
    %v1206 = vpack.c.b16 %v1094, %v1090
    %v1207 = vpack.c.b16 %v1095, %v1091
    %v1208 = vpack.c.b16 %v1096, %v1092
    %v1209 = vpack.c.b16 %v1101, %v1097
    %v1210 = vpack.c.b16 %v1102, %v1098
    %v1211 = vpack.c.b16 %v1103, %v1099
    %v1212 = vpack.c.b16 %v1104, %v1100
    %v1213 = vpack.c.b16 %v1109, %v1105
    %v1214 = vpack.c.b16 %v1110, %v1106
    %v1215 = vpack.c.b16 %v1111, %v1107
    %v1216 = vpack.c.b16 %v1112, %v1108
    %v1217 = vpack.c.b16 %v1117, %v1113
    %v1218 = vpack.c.b16 %v1118, %v1114
    %v1219 = vpack.c.b16 %v1119, %v1115
    %v1220 = vpack.c.b16 %v1120, %v1116
    %v1221 = vpack.c.b16 %v1125, %v1121
    %v1222 = vpack.c.b16 %v1126, %v1122
    %v1223 = vpack.c.b16 %v1127, %v1123
    %v1224 = vpack.c.b16 %v1128, %v1124
    %v1225 = vpack.c.b16 %v1133, %v1129
    %v1226 = vpack.c.b16 %v1134, %v1130
    %v1227 = vpack.c.b16 %v1135, %v1131
    %v1228 = vpack.c.b16 %v1136, %v1132
    %v1229 = vpack.c.b16 %v1141, %v1137
    %v1230 = vpack.c.b16 %v1142, %v1138
    %v1231 = vpack.c.b16 %v1143, %v1139
    %v1232 = vpack.c.b16 %v1144, %v1140
    %v1233 = vpack.c.b16 %v1149, %v1145
    %v1234 = vpack.c.b16 %v1150, %v1146
    %v1235 = vpack.c.b16 %v1151, %v1147
    %v1236 = vpack.c.b16 %v1152, %v1148
    %v1237 = vpack.c.b16 %v1157, %v1153
    %v1238 = vpack.c.b16 %v1158, %v1154
    %v1239 = vpack.c.b16 %v1159, %v1155
    %v1240 = vpack.c.b16 %v1160, %v1156
    %v1241 = vpack.c.b16 %v1165, %v1161
    %v1242 = vpack.c.b16 %v1166, %v1162
    %v1243 = vpack.c.b16 %v1167, %v1163
    %v1244 = vpack.c.b16 %v1168, %v1164
    %v1245 = vpack.c.b16 %v1173, %v1169
    %v1246 = vpack.c.b16 %v1174, %v1170
    %v1247 = vpack.c.b16 %v1175, %v1171
    %v1248 = vpack.c.b16 %v1176, %v1172
    %v1249 = vpack.c.b16 %v1181, %v1177
    %v1250 = vpack.c.b16 %v1182, %v1178
    %v1251 = vpack.c.b16 %v1183, %v1179
    %v1252 = vpack.c.b16 %v1184, %v1180
    %v1253 = vpack.c.b16 %v1189, %v1185
    %v1254 = vpack.c.b16 %v1190, %v1186
    %v1255 = vpack.c.b16 %v1191, %v1187
    %v1256 = vpack.c.b16 %v1192, %v1188
    %1321 = vmatprep.subr.bf16.mxu0 %v1222
    %1322 = vmatpush1.bf16.msra.mxu0 %v1221
    %1323 = vmatprep.subr.bf16.mxu0 %v1218
    %1324 = vmatpush1.bf16.msra.mxu0 %v1217
    %1325 = vmatprep.subr.bf16.mxu0 %v1214
    %1326 = vmatpush1.bf16.msra.mxu0 %v1213
    %1327 = vmatprep.subr.bf16.mxu0 %v1210
    %1328 = vmatpush1.bf16.msra.mxu0 %v1209
    %1329 = vmatprep.subr.bf16.mxu0 %v1206
    %1330 = vmatpush1.bf16.msra.mxu0 %v1205
    %1331 = vmatprep.subr.bf16.mxu0 %v1202
    %1332 = vmatpush1.bf16.msra.mxu0 %v1201
    %1333 = vmatprep.subr.bf16.mxu0 %v1198
    %1334 = vmatpush1.bf16.msra.mxu0 %v1197
    %1335 = vmatprep.subr.bf16.mxu0 %v1194
    %1336 = vmatpush1.bf16.msra.mxu0 %v1193
    %1337 = vmatprep.subr.bf16.mxu0 %v1254
    %1338 = vmatpush2.bf16.msra.mxu0 %v1253
    %1339 = vmatprep.subr.bf16.mxu0 %v1250
    %1340 = vmatpush2.bf16.msra.mxu0 %v1249
    %1341 = vmatprep.subr.bf16.mxu0 %v1246
    %1342 = vmatpush2.bf16.msra.mxu0 %v1245
    %1343 = vmatprep.subr.bf16.mxu0 %v1242
    %1344 = vmatpush2.bf16.msra.mxu0 %v1241
    %1345 = vmatprep.subr.bf16.mxu0 %v1238
    %1346 = vmatpush2.bf16.msra.mxu0 %v1237
    %1347 = vmatprep.subr.bf16.mxu0 %v1234
    %1348 = vmatpush2.bf16.msra.mxu0 %v1233
    %1349 = vmatprep.subr.bf16.mxu0 %v1230
    %1350 = vmatpush2.bf16.msra.mxu0 %v1229
    %1351 = vmatprep.subr.bf16.mxu0 %v1226
    %1352 = vmatpush2.bf16.msra.mxu0 %v1225
    %1353 = vmatprep.mubr.bf16.mxu0 %v884
    %1354 = vmatmul.mubr.bf16.gmra.mxu0 %v883
    %v1355 = vpop.f32.mrf.mxu0
    %v1356 = vadd.f32 %v984, %v1355
    %v1357 = vpop.f32.mrf.mxu0
    %v1358 = vadd.f32 %v988, %v1357
    %v1359 = vpop.f32.mrf.mxu0
    %v1360 = vadd.f32 %v984, %v1359
    %v1361 = vpop.f32.mrf.mxu0
    %v1362 = vadd.f32 %v988, %v1361
    %1363 = vmatprep.mubr.bf16.mxu0 %v886
    %1364 = vmatmul.mubr.bf16.gmra.mxu0 %v885
    %v1365 = vpop.f32.mrf.mxu0
    %v1366 = vadd.f32 %v984, %v1365
    %v1367 = vpop.f32.mrf.mxu0
    %v1368 = vadd.f32 %v988, %v1367
    %v1369 = vpop.f32.mrf.mxu0
    %v1370 = vadd.f32 %v984, %v1369
    %v1371 = vpop.f32.mrf.mxu0
    %v1372 = vadd.f32 %v988, %v1371
    %1373 = vmatprep.mubr.bf16.mxu0 %v888
    %1374 = vmatmul.mubr.bf16.gmra.mxu0 %v887
    %v1375 = vpop.f32.mrf.mxu0
    %v1376 = vadd.f32 %v984, %v1375
    %v1377 = vpop.f32.mrf.mxu0
    %v1378 = vadd.f32 %v988, %v1377
    %v1379 = vpop.f32.mrf.mxu0
    %v1380 = vadd.f32 %v984, %v1379
    %v1381 = vpop.f32.mrf.mxu0
    %v1382 = vadd.f32 %v988, %v1381
    %1383 = vmatprep.mubr.bf16.mxu0 %v890
    %1384 = vmatmul.mubr.bf16.gmra.mxu0 %v889
    %v1385 = vpop.f32.mrf.mxu0
    %v1386 = vadd.f32 %v984, %v1385
    %v1387 = vpop.f32.mrf.mxu0
    %v1388 = vadd.f32 %v988, %v1387
    %v1389 = vpop.f32.mrf.mxu0
    %v1390 = vadd.f32 %v984, %v1389
    %v1391 = vpop.f32.mrf.mxu0
    %v1392 = vadd.f32 %v988, %v1391
    %1393 = vmatprep.mubr.bf16.mxu0 %v892
    %1394 = vmatmul.mubr.bf16.gmra.mxu0 %v891
    %v1395 = vpop.f32.mrf.mxu0
    %v1396 = vadd.f32 %v984, %v1395
    %v1397 = vpop.f32.mrf.mxu0
    %v1398 = vadd.f32 %v988, %v1397
    %v1399 = vpop.f32.mrf.mxu0
    %v1400 = vadd.f32 %v984, %v1399
    %v1401 = vpop.f32.mrf.mxu0
    %v1402 = vadd.f32 %v988, %v1401
    %1403 = vmatprep.mubr.bf16.mxu0 %v894
    %1404 = vmatmul.mubr.bf16.gmra.mxu0 %v893
    %v1405 = vpop.f32.mrf.mxu0
    %v1406 = vadd.f32 %v984, %v1405
    %v1407 = vpop.f32.mrf.mxu0
    %v1408 = vadd.f32 %v988, %v1407
    %v1409 = vpop.f32.mrf.mxu0
    %v1410 = vadd.f32 %v984, %v1409
    %v1411 = vpop.f32.mrf.mxu0
    %v1412 = vadd.f32 %v988, %v1411
    %1413 = vmatprep.mubr.bf16.mxu0 %v896
    %1414 = vmatmul.mubr.bf16.gmra.mxu0 %v895
    %v1415 = vpop.f32.mrf.mxu0
    %v1416 = vadd.f32 %v984, %v1415
    %v1417 = vpop.f32.mrf.mxu0
    %v1418 = vadd.f32 %v988, %v1417
    %v1419 = vpop.f32.mrf.mxu0
    %v1420 = vadd.f32 %v984, %v1419
    %v1421 = vpop.f32.mrf.mxu0
    %v1422 = vadd.f32 %v988, %v1421
    %1423 = vmatprep.mubr.bf16.mxu0 %v898
    %1424 = vmatmul.mubr.bf16.gmra.mxu0 %v897
    %v1425 = vpop.f32.mrf.mxu0
    %v1426 = vadd.f32 %v984, %v1425
    %v1427 = vpop.f32.mrf.mxu0
    %v1428 = vadd.f32 %v988, %v1427
    %v1429 = vpop.f32.mrf.mxu0
    %v1430 = vadd.f32 %v984, %v1429
    %v1431 = vpop.f32.mrf.mxu0
    %v1432 = vadd.f32 %v988, %v1431
    %1433 = vmatprep.mubr.bf16.mxu0 %v900
    %1434 = vmatmul.mubr.bf16.gmra.mxu0 %v899
    %v1435 = vpop.f32.mrf.mxu0
    %v1436 = vadd.f32 %v984, %v1435
    %v1437 = vpop.f32.mrf.mxu0
    %v1438 = vadd.f32 %v988, %v1437
    %v1439 = vpop.f32.mrf.mxu0
    %v1440 = vadd.f32 %v984, %v1439
    %v1441 = vpop.f32.mrf.mxu0
    %v1442 = vadd.f32 %v988, %v1441
    %1443 = vmatprep.mubr.bf16.mxu0 %v902
    %1444 = vmatmul.mubr.bf16.gmra.mxu0 %v901
    %v1445 = vpop.f32.mrf.mxu0
    %v1446 = vadd.f32 %v984, %v1445
    %v1447 = vpop.f32.mrf.mxu0
    %v1448 = vadd.f32 %v988, %v1447
    %v1449 = vpop.f32.mrf.mxu0
    %v1450 = vadd.f32 %v984, %v1449
    %v1451 = vpop.f32.mrf.mxu0
    %v1452 = vadd.f32 %v988, %v1451
    %1453 = vmatprep.mubr.bf16.mxu0 %v904
    %1454 = vmatmul.mubr.bf16.gmra.mxu0 %v903
    %v1455 = vpop.f32.mrf.mxu0
    %v1456 = vadd.f32 %v984, %v1455
    %v1457 = vpop.f32.mrf.mxu0
    %v1458 = vadd.f32 %v988, %v1457
    %v1459 = vpop.f32.mrf.mxu0
    %v1460 = vadd.f32 %v984, %v1459
    %v1461 = vpop.f32.mrf.mxu0
    %v1462 = vadd.f32 %v988, %v1461
    %1463 = vmatprep.mubr.bf16.mxu0 %v906
    %1464 = vmatmul.mubr.bf16.gmra.mxu0 %v905
    %v1465 = vpop.f32.mrf.mxu0
    %v1466 = vadd.f32 %v984, %v1465
    %v1467 = vpop.f32.mrf.mxu0
    %v1468 = vadd.f32 %v988, %v1467
    %v1469 = vpop.f32.mrf.mxu0
    %v1470 = vadd.f32 %v984, %v1469
    %v1471 = vpop.f32.mrf.mxu0
    %v1472 = vadd.f32 %v988, %v1471
    %1473 = vmatprep.mubr.bf16.mxu0 %v908
    %1474 = vmatmul.mubr.bf16.gmra.mxu0 %v907
    %v1475 = vpop.f32.mrf.mxu0
    %v1476 = vadd.f32 %v984, %v1475
    %v1477 = vpop.f32.mrf.mxu0
    %v1478 = vadd.f32 %v988, %v1477
    %v1479 = vpop.f32.mrf.mxu0
    %v1480 = vadd.f32 %v984, %v1479
    %v1481 = vpop.f32.mrf.mxu0
    %v1482 = vadd.f32 %v988, %v1481
    %1483 = vmatprep.mubr.bf16.mxu0 %v910
    %1484 = vmatmul.mubr.bf16.gmra.mxu0 %v909
    %v1485 = vpop.f32.mrf.mxu0
    %v1486 = vadd.f32 %v984, %v1485
    %v1487 = vpop.f32.mrf.mxu0
    %v1488 = vadd.f32 %v988, %v1487
    %v1489 = vpop.f32.mrf.mxu0
    %v1490 = vadd.f32 %v984, %v1489
    %v1491 = vpop.f32.mrf.mxu0
    %v1492 = vadd.f32 %v988, %v1491
    %1493 = vmatprep.mubr.bf16.mxu0 %v912
    %1494 = vmatmul.mubr.bf16.gmra.mxu0 %v911
    %v1495 = vpop.f32.mrf.mxu0
    %v1496 = vadd.f32 %v984, %v1495
    %v1497 = vpop.f32.mrf.mxu0
    %v1498 = vadd.f32 %v988, %v1497
    %v1499 = vpop.f32.mrf.mxu0
    %v1500 = vadd.f32 %v984, %v1499
    %v1501 = vpop.f32.mrf.mxu0
    %v1502 = vadd.f32 %v988, %v1501
    %1503 = vmatprep.mubr.bf16.mxu0 %v914
    %1504 = vmatmul.mubr.bf16.gmra.mxu0 %v913
    %v1505 = vpop.f32.mrf.mxu0
    %v1506 = vadd.f32 %v984, %v1505
    %v1507 = vpop.f32.mrf.mxu0
    %v1508 = vadd.f32 %v988, %v1507
    %v1509 = vpop.f32.mrf.mxu0
    %v1510 = vadd.f32 %v984, %v1509
    %v1511 = vpop.f32.mrf.mxu0
    %v1512 = vadd.f32 %v988, %v1511
    %1513 = vdwg.mxu0
    %1514 = vmatprep.subr.bf16.mxu0 %v1224
    %1515 = vmatpush1.bf16.msra.mxu0 %v1223
    %1516 = vmatprep.subr.bf16.mxu0 %v1220
    %1517 = vmatpush1.bf16.msra.mxu0 %v1219
    %1518 = vmatprep.subr.bf16.mxu0 %v1216
    %1519 = vmatpush1.bf16.msra.mxu0 %v1215
    %1520 = vmatprep.subr.bf16.mxu0 %v1212
    %1521 = vmatpush1.bf16.msra.mxu0 %v1211
    %1522 = vmatprep.subr.bf16.mxu0 %v1208
    %1523 = vmatpush1.bf16.msra.mxu0 %v1207
    %1524 = vmatprep.subr.bf16.mxu0 %v1204
    %1525 = vmatpush1.bf16.msra.mxu0 %v1203
    %1526 = vmatprep.subr.bf16.mxu0 %v1200
    %1527 = vmatpush1.bf16.msra.mxu0 %v1199
    %1528 = vmatprep.subr.bf16.mxu0 %v1196
    %1529 = vmatpush1.bf16.msra.mxu0 %v1195
    %1530 = vmatprep.subr.bf16.mxu0 %v1256
    %1531 = vmatpush2.bf16.msra.mxu0 %v1255
    %1532 = vmatprep.subr.bf16.mxu0 %v1252
    %1533 = vmatpush2.bf16.msra.mxu0 %v1251
    %1534 = vmatprep.subr.bf16.mxu0 %v1248
    %1535 = vmatpush2.bf16.msra.mxu0 %v1247
    %1536 = vmatprep.subr.bf16.mxu0 %v1244
    %1537 = vmatpush2.bf16.msra.mxu0 %v1243
    %1538 = vmatprep.subr.bf16.mxu0 %v1240
    %1539 = vmatpush2.bf16.msra.mxu0 %v1239
    %1540 = vmatprep.subr.bf16.mxu0 %v1236
    %1541 = vmatpush2.bf16.msra.mxu0 %v1235
    %1542 = vmatprep.subr.bf16.mxu0 %v1232
    %1543 = vmatpush2.bf16.msra.mxu0 %v1231
    %1544 = vmatprep.subr.bf16.mxu0 %v1228
    %1545 = vmatpush2.bf16.msra.mxu0 %v1227
    %1546 = vmatprep.mubr.bf16.mxu0 %v884
    %1547 = vmatmul.mubr.bf16.gmra.mxu0 %v883
    %v1548 = vpop.f32.mrf.mxu0
    %v1549 = vadd.f32 %v992, %v1548
    %v1550 = vpop.f32.mrf.mxu0
    %v1551 = vadd.f32 %v996, %v1550
    %v1552 = vpop.f32.mrf.mxu0
    %v1553 = vadd.f32 %v992, %v1552
    %v1554 = vpop.f32.mrf.mxu0
    %v1555 = vadd.f32 %v996, %v1554
    %1556 = vmatprep.mubr.bf16.mxu0 %v886
    %1557 = vmatmul.mubr.bf16.gmra.mxu0 %v885
    %v1558 = vpop.f32.mrf.mxu0
    %v1559 = vadd.f32 %v992, %v1558
    %v1560 = vpop.f32.mrf.mxu0
    %v1561 = vadd.f32 %v996, %v1560
    %v1562 = vpop.f32.mrf.mxu0
    %v1563 = vadd.f32 %v992, %v1562
    %v1564 = vpop.f32.mrf.mxu0
    %v1565 = vadd.f32 %v996, %v1564
    %1566 = vmatprep.mubr.bf16.mxu0 %v888
    %1567 = vmatmul.mubr.bf16.gmra.mxu0 %v887
    %v1568 = vpop.f32.mrf.mxu0
    %v1569 = vadd.f32 %v992, %v1568
    %v1570 = vpop.f32.mrf.mxu0
    %v1571 = vadd.f32 %v996, %v1570
    %v1572 = vpop.f32.mrf.mxu0
    %v1573 = vadd.f32 %v992, %v1572
    %v1574 = vpop.f32.mrf.mxu0
    %v1575 = vadd.f32 %v996, %v1574
    %1576 = vmatprep.mubr.bf16.mxu0 %v890
    %1577 = vmatmul.mubr.bf16.gmra.mxu0 %v889
    %v1578 = vpop.f32.mrf.mxu0
    %v1579 = vadd.f32 %v992, %v1578
    %v1580 = vpop.f32.mrf.mxu0
    %v1581 = vadd.f32 %v996, %v1580
    %v1582 = vpop.f32.mrf.mxu0
    %v1583 = vadd.f32 %v992, %v1582
    %v1584 = vpop.f32.mrf.mxu0
    %v1585 = vadd.f32 %v996, %v1584
    %1586 = vmatprep.mubr.bf16.mxu0 %v892
    %1587 = vmatmul.mubr.bf16.gmra.mxu0 %v891
    %v1588 = vpop.f32.mrf.mxu0
    %v1589 = vadd.f32 %v992, %v1588
    %v1590 = vpop.f32.mrf.mxu0
    %v1591 = vadd.f32 %v996, %v1590
    %v1592 = vpop.f32.mrf.mxu0
    %v1593 = vadd.f32 %v992, %v1592
    %v1594 = vpop.f32.mrf.mxu0
    %v1595 = vadd.f32 %v996, %v1594
    %1596 = vmatprep.mubr.bf16.mxu0 %v894
    %1597 = vmatmul.mubr.bf16.gmra.mxu0 %v893
    %v1598 = vpop.f32.mrf.mxu0
    %v1599 = vadd.f32 %v992, %v1598
    %v1600 = vpop.f32.mrf.mxu0
    %v1601 = vadd.f32 %v996, %v1600
    %v1602 = vpop.f32.mrf.mxu0
    %v1603 = vadd.f32 %v992, %v1602
    %v1604 = vpop.f32.mrf.mxu0
    %v1605 = vadd.f32 %v996, %v1604
    %1606 = vmatprep.mubr.bf16.mxu0 %v896
    %1607 = vmatmul.mubr.bf16.gmra.mxu0 %v895
    %v1608 = vpop.f32.mrf.mxu0
    %v1609 = vadd.f32 %v992, %v1608
    %v1610 = vpop.f32.mrf.mxu0
    %v1611 = vadd.f32 %v996, %v1610
    %v1612 = vpop.f32.mrf.mxu0
    %v1613 = vadd.f32 %v992, %v1612
    %v1614 = vpop.f32.mrf.mxu0
    %v1615 = vadd.f32 %v996, %v1614
    %1616 = vmatprep.mubr.bf16.mxu0 %v898
    %1617 = vmatmul.mubr.bf16.gmra.mxu0 %v897
    %v1618 = vpop.f32.mrf.mxu0
    %v1619 = vadd.f32 %v992, %v1618
    %v1620 = vpop.f32.mrf.mxu0
    %v1621 = vadd.f32 %v996, %v1620
    %v1622 = vpop.f32.mrf.mxu0
    %v1623 = vadd.f32 %v992, %v1622
    %v1624 = vpop.f32.mrf.mxu0
    %v1625 = vadd.f32 %v996, %v1624
    %1626 = vmatprep.mubr.bf16.mxu0 %v900
    %1627 = vmatmul.mubr.bf16.gmra.mxu0 %v899
    %v1628 = vpop.f32.mrf.mxu0
    %v1629 = vadd.f32 %v992, %v1628
    %v1630 = vpop.f32.mrf.mxu0
    %v1631 = vadd.f32 %v996, %v1630
    %v1632 = vpop.f32.mrf.mxu0
    %v1633 = vadd.f32 %v992, %v1632
    %v1634 = vpop.f32.mrf.mxu0
    %v1635 = vadd.f32 %v996, %v1634
    %1636 = vmatprep.mubr.bf16.mxu0 %v902
    %1637 = vmatmul.mubr.bf16.gmra.mxu0 %v901
    %v1638 = vpop.f32.mrf.mxu0
    %v1639 = vadd.f32 %v992, %v1638
    %v1640 = vpop.f32.mrf.mxu0
    %v1641 = vadd.f32 %v996, %v1640
    %v1642 = vpop.f32.mrf.mxu0
    %v1643 = vadd.f32 %v992, %v1642
    %v1644 = vpop.f32.mrf.mxu0
    %v1645 = vadd.f32 %v996, %v1644
    %1646 = vmatprep.mubr.bf16.mxu0 %v904
    %1647 = vmatmul.mubr.bf16.gmra.mxu0 %v903
    %v1648 = vpop.f32.mrf.mxu0
    %v1649 = vadd.f32 %v992, %v1648
    %v1650 = vpop.f32.mrf.mxu0
    %v1651 = vadd.f32 %v996, %v1650
    %v1652 = vpop.f32.mrf.mxu0
    %v1653 = vadd.f32 %v992, %v1652
    %v1654 = vpop.f32.mrf.mxu0
    %v1655 = vadd.f32 %v996, %v1654
    %1656 = vmatprep.mubr.bf16.mxu0 %v906
    %1657 = vmatmul.mubr.bf16.gmra.mxu0 %v905
    %v1658 = vpop.f32.mrf.mxu0
    %v1659 = vadd.f32 %v992, %v1658
    %v1660 = vpop.f32.mrf.mxu0
    %v1661 = vadd.f32 %v996, %v1660
    %v1662 = vpop.f32.mrf.mxu0
    %v1663 = vadd.f32 %v992, %v1662
    %v1664 = vpop.f32.mrf.mxu0
    %v1665 = vadd.f32 %v996, %v1664
    %1666 = vmatprep.mubr.bf16.mxu0 %v908
    %1667 = vmatmul.mubr.bf16.gmra.mxu0 %v907
    %v1668 = vpop.f32.mrf.mxu0
    %v1669 = vadd.f32 %v992, %v1668
    %v1670 = vpop.f32.mrf.mxu0
    %v1671 = vadd.f32 %v996, %v1670
    %v1672 = vpop.f32.mrf.mxu0
    %v1673 = vadd.f32 %v992, %v1672
    %v1674 = vpop.f32.mrf.mxu0
    %v1675 = vadd.f32 %v996, %v1674
    %1676 = vmatprep.mubr.bf16.mxu0 %v910
    %1677 = vmatmul.mubr.bf16.gmra.mxu0 %v909
    %v1678 = vpop.f32.mrf.mxu0
    %v1679 = vadd.f32 %v992, %v1678
    %v1680 = vpop.f32.mrf.mxu0
    %v1681 = vadd.f32 %v996, %v1680
    %v1682 = vpop.f32.mrf.mxu0
    %v1683 = vadd.f32 %v992, %v1682
    %v1684 = vpop.f32.mrf.mxu0
    %v1685 = vadd.f32 %v996, %v1684
    %1686 = vmatprep.mubr.bf16.mxu0 %v912
    %1687 = vmatmul.mubr.bf16.gmra.mxu0 %v911
    %v1688 = vpop.f32.mrf.mxu0
    %v1689 = vadd.f32 %v992, %v1688
    %v1690 = vpop.f32.mrf.mxu0
    %v1691 = vadd.f32 %v996, %v1690
    %v1692 = vpop.f32.mrf.mxu0
    %v1693 = vadd.f32 %v992, %v1692
    %v1694 = vpop.f32.mrf.mxu0
    %v1695 = vadd.f32 %v996, %v1694
    %1696 = vmatprep.mubr.bf16.mxu0 %v914
    %1697 = vmatmul.mubr.bf16.gmra.mxu0 %v913
    %v1698 = vpop.f32.mrf.mxu0
    %v1699 = vadd.f32 %v992, %v1698
    %v1700 = vpop.f32.mrf.mxu0
    %v1701 = vadd.f32 %v996, %v1700
    %v1702 = vpop.f32.mrf.mxu0
    %v1703 = vadd.f32 %v992, %v1702
    %v1704 = vpop.f32.mrf.mxu0
    %v1705 = vadd.f32 %v996, %v1704
    %1706 = vdwg.mxu0
    %v1707 = vmax.f32 %v1356, 0.0
    %v1708 = vmax.f32 %v1358, 0.0
    %v1709 = vmax.f32 %v1549, 0.0
    %v1710 = vmax.f32 %v1551, 0.0
    %v1711 = vmax.f32 %v1360, 0.0
    %v1712 = vmax.f32 %v1362, 0.0
    %v1713 = vmax.f32 %v1553, 0.0
    %v1714 = vmax.f32 %v1555, 0.0
    %v1715 = vmax.f32 %v1366, 0.0
    %v1716 = vmax.f32 %v1368, 0.0
    %v1717 = vmax.f32 %v1559, 0.0
    %v1718 = vmax.f32 %v1561, 0.0
    %v1719 = vmax.f32 %v1370, 0.0
    %v1720 = vmax.f32 %v1372, 0.0
    %v1721 = vmax.f32 %v1563, 0.0
    %v1722 = vmax.f32 %v1565, 0.0
    %v1723 = vmax.f32 %v1376, 0.0
    %v1724 = vmax.f32 %v1378, 0.0
    %v1725 = vmax.f32 %v1569, 0.0
    %v1726 = vmax.f32 %v1571, 0.0
    %v1727 = vmax.f32 %v1380, 0.0
    %v1728 = vmax.f32 %v1382, 0.0
    %v1729 = vmax.f32 %v1573, 0.0
    %v1730 = vmax.f32 %v1575, 0.0
    %v1731 = vmax.f32 %v1386, 0.0
    %v1732 = vmax.f32 %v1388, 0.0
    %v1733 = vmax.f32 %v1579, 0.0
    %v1734 = vmax.f32 %v1581, 0.0
    %v1735 = vmax.f32 %v1390, 0.0
    %v1736 = vmax.f32 %v1392, 0.0
    %v1737 = vmax.f32 %v1583, 0.0
    %v1738 = vmax.f32 %v1585, 0.0
    %v1739 = vmax.f32 %v1396, 0.0
    %v1740 = vmax.f32 %v1398, 0.0
    %v1741 = vmax.f32 %v1589, 0.0
    %v1742 = vmax.f32 %v1591, 0.0
    %v1743 = vmax.f32 %v1400, 0.0
    %v1744 = vmax.f32 %v1402, 0.0
    %v1745 = vmax.f32 %v1593, 0.0
    %v1746 = vmax.f32 %v1595, 0.0
    %v1747 = vmax.f32 %v1406, 0.0
    %v1748 = vmax.f32 %v1408, 0.0
    %v1749 = vmax.f32 %v1599, 0.0
    %v1750 = vmax.f32 %v1601, 0.0
    %v1751 = vmax.f32 %v1410, 0.0
    %v1752 = vmax.f32 %v1412, 0.0
    %v1753 = vmax.f32 %v1603, 0.0
    %v1754 = vmax.f32 %v1605, 0.0
    %v1755 = vmax.f32 %v1416, 0.0
    %v1756 = vmax.f32 %v1418, 0.0
    %v1757 = vmax.f32 %v1609, 0.0
    %v1758 = vmax.f32 %v1611, 0.0
    %v1759 = vmax.f32 %v1420, 0.0
    %v1760 = vmax.f32 %v1422, 0.0
    %v1761 = vmax.f32 %v1613, 0.0
    %v1762 = vmax.f32 %v1615, 0.0
    %v1763 = vmax.f32 %v1426, 0.0
    %v1764 = vmax.f32 %v1428, 0.0
    %v1765 = vmax.f32 %v1619, 0.0
    %v1766 = vmax.f32 %v1621, 0.0
    %v1767 = vmax.f32 %v1430, 0.0
    %v1768 = vmax.f32 %v1432, 0.0
    %v1769 = vmax.f32 %v1623, 0.0
    %v1770 = vmax.f32 %v1625, 0.0
    %v1771 = vmax.f32 %v1436, 0.0
    %v1772 = vmax.f32 %v1438, 0.0
    %v1773 = vmax.f32 %v1629, 0.0
    %v1774 = vmax.f32 %v1631, 0.0
    %v1775 = vmax.f32 %v1440, 0.0
    %v1776 = vmax.f32 %v1442, 0.0
    %v1777 = vmax.f32 %v1633, 0.0
    %v1778 = vmax.f32 %v1635, 0.0
    %v1779 = vmax.f32 %v1446, 0.0
    %v1780 = vmax.f32 %v1448, 0.0
    %v1781 = vmax.f32 %v1639, 0.0
    %v1782 = vmax.f32 %v1641, 0.0
    %v1783 = vmax.f32 %v1450, 0.0
    %v1784 = vmax.f32 %v1452, 0.0
    %v1785 = vmax.f32 %v1643, 0.0
    %v1786 = vmax.f32 %v1645, 0.0
    %v1787 = vmax.f32 %v1456, 0.0
    %v1788 = vmax.f32 %v1458, 0.0
    %v1789 = vmax.f32 %v1649, 0.0
    %v1790 = vmax.f32 %v1651, 0.0
    %v1791 = vmax.f32 %v1460, 0.0
    %v1792 = vmax.f32 %v1462, 0.0
    %v1793 = vmax.f32 %v1653, 0.0
    %v1794 = vmax.f32 %v1655, 0.0
    %v1795 = vmax.f32 %v1466, 0.0
    %v1796 = vmax.f32 %v1468, 0.0
    %v1797 = vmax.f32 %v1659, 0.0
    %v1798 = vmax.f32 %v1661, 0.0
    %v1799 = vmax.f32 %v1470, 0.0
    %v1800 = vmax.f32 %v1472, 0.0
    %v1801 = vmax.f32 %v1663, 0.0
    %v1802 = vmax.f32 %v1665, 0.0
    %v1803 = vmax.f32 %v1476, 0.0
    %v1804 = vmax.f32 %v1478, 0.0
    %v1805 = vmax.f32 %v1669, 0.0
    %v1806 = vmax.f32 %v1671, 0.0
    %v1807 = vmax.f32 %v1480, 0.0
    %v1808 = vmax.f32 %v1482, 0.0
    %v1809 = vmax.f32 %v1673, 0.0
    %v1810 = vmax.f32 %v1675, 0.0
    %v1811 = vmax.f32 %v1486, 0.0
    %v1812 = vmax.f32 %v1488, 0.0
    %v1813 = vmax.f32 %v1679, 0.0
    %v1814 = vmax.f32 %v1681, 0.0
    %v1815 = vmax.f32 %v1490, 0.0
    %v1816 = vmax.f32 %v1492, 0.0
    %v1817 = vmax.f32 %v1683, 0.0
    %v1818 = vmax.f32 %v1685, 0.0
    %v1819 = vmax.f32 %v1496, 0.0
    %v1820 = vmax.f32 %v1498, 0.0
    %v1821 = vmax.f32 %v1689, 0.0
    %v1822 = vmax.f32 %v1691, 0.0
    %v1823 = vmax.f32 %v1500, 0.0
    %v1824 = vmax.f32 %v1502, 0.0
    %v1825 = vmax.f32 %v1693, 0.0
    %v1826 = vmax.f32 %v1695, 0.0
    %v1827 = vmax.f32 %v1506, 0.0
    %v1828 = vmax.f32 %v1508, 0.0
    %v1829 = vmax.f32 %v1699, 0.0
    %v1830 = vmax.f32 %v1701, 0.0
    %v1831 = vmax.f32 %v1510, 0.0
    %v1832 = vmax.f32 %v1512, 0.0
    %v1833 = vmax.f32 %v1703, 0.0
    %v1834 = vmax.f32 %v1705, 0.0
    %v1835 = vld [vmem:[%s8] sm:$0xff]
    %v1836 = vld [vmem:[%s8 + $0x8] sm:$0xff]
    %v1837 = vld [vmem:[%s8 + $0x10] sm:$0xff]
    %v1838 = vld [vmem:[%s8 + $0x18] sm:$0xff]
    %v1839 = vld [vmem:[%s8 + $0x20] sm:$0xff]
    %v1840 = vld [vmem:[%s8 + $0x28] sm:$0xff]
    %v1841 = vld [vmem:[%s8 + $0x30] sm:$0xff]
    %v1842 = vld [vmem:[%s8 + $0x38] sm:$0xff]
    %v1843 = vld [vmem:[%s8 + $0x40] sm:$0xff]
    %v1844 = vld [vmem:[%s8 + $0x48] sm:$0xff]
    %v1845 = vld [vmem:[%s8 + $0x50] sm:$0xff]
    %v1846 = vld [vmem:[%s8 + $0x58] sm:$0xff]
    %v1847 = vld [vmem:[%s8 + $0x60] sm:$0xff]
    %v1848 = vld [vmem:[%s8 + $0x68] sm:$0xff]
    %v1849 = vld [vmem:[%s8 + $0x70] sm:$0xff]
    %v1850 = vld [vmem:[%s8 + $0x78] sm:$0xff]
    %v1851 = vld [vmem:[%s8 + $0x80] sm:$0xff]
    %v1852 = vld [vmem:[%s8 + $0x88] sm:$0xff]
    %v1853 = vld [vmem:[%s8 + $0x90] sm:$0xff]
    %v1854 = vld [vmem:[%s8 + $0x98] sm:$0xff]
    %v1855 = vld [vmem:[%s8 + $0xa0] sm:$0xff]
    %v1856 = vld [vmem:[%s8 + $0xa8] sm:$0xff]
    %v1857 = vld [vmem:[%s8 + $0xb0] sm:$0xff]
    %v1858 = vld [vmem:[%s8 + $0xb8] sm:$0xff]
    %v1859 = vld [vmem:[%s8 + $0xc0] sm:$0xff]
    %v1860 = vld [vmem:[%s8 + $0xc8] sm:$0xff]
    %v1861 = vld [vmem:[%s8 + $0xd0] sm:$0xff]
    %v1862 = vld [vmem:[%s8 + $0xd8] sm:$0xff]
    %v1863 = vld [vmem:[%s8 + $0xe0] sm:$0xff]
    %v1864 = vld [vmem:[%s8 + $0xe8] sm:$0xff]
    %v1865 = vld [vmem:[%s8 + $0xf0] sm:$0xff]
    %v1866 = vld [vmem:[%s8 + $0xf8] sm:$0xff]
    %v1867 = vld [vmem:[%s8 + $0x100] sm:$0xff]
    %v1868 = vld [vmem:[%s8 + $0x108] sm:$0xff]
    %v1869 = vld [vmem:[%s8 + $0x110] sm:$0xff]
    %v1870 = vld [vmem:[%s8 + $0x118] sm:$0xff]
    %v1871 = vld [vmem:[%s8 + $0x120] sm:$0xff]
    %v1872 = vld [vmem:[%s8 + $0x128] sm:$0xff]
    %v1873 = vld [vmem:[%s8 + $0x130] sm:$0xff]
    %v1874 = vld [vmem:[%s8 + $0x138] sm:$0xff]
    %v1875 = vld [vmem:[%s8 + $0x140] sm:$0xff]
    %v1876 = vld [vmem:[%s8 + $0x148] sm:$0xff]
    %v1877 = vld [vmem:[%s8 + $0x150] sm:$0xff]
    %v1878 = vld [vmem:[%s8 + $0x158] sm:$0xff]
    %v1879 = vld [vmem:[%s8 + $0x160] sm:$0xff]
    %v1880 = vld [vmem:[%s8 + $0x168] sm:$0xff]
    %v1881 = vld [vmem:[%s8 + $0x170] sm:$0xff]
    %v1882 = vld [vmem:[%s8 + $0x178] sm:$0xff]
    %v1883 = vld [vmem:[%s8 + $0x180] sm:$0xff]
    %v1884 = vld [vmem:[%s8 + $0x188] sm:$0xff]
    %v1885 = vld [vmem:[%s8 + $0x190] sm:$0xff]
    %v1886 = vld [vmem:[%s8 + $0x198] sm:$0xff]
    %v1887 = vld [vmem:[%s8 + $0x1a0] sm:$0xff]
    %v1888 = vld [vmem:[%s8 + $0x1a8] sm:$0xff]
    %v1889 = vld [vmem:[%s8 + $0x1b0] sm:$0xff]
    %v1890 = vld [vmem:[%s8 + $0x1b8] sm:$0xff]
    %v1891 = vld [vmem:[%s8 + $0x1c0] sm:$0xff]
    %v1892 = vld [vmem:[%s8 + $0x1c8] sm:$0xff]
    %v1893 = vld [vmem:[%s8 + $0x1d0] sm:$0xff]
    %v1894 = vld [vmem:[%s8 + $0x1d8] sm:$0xff]
    %v1895 = vld [vmem:[%s8 + $0x1e0] sm:$0xff]
    %v1896 = vld [vmem:[%s8 + $0x1e8] sm:$0xff]
    %v1897 = vld [vmem:[%s8 + $0x1f0] sm:$0xff]
    %v1898 = vld [vmem:[%s8 + $0x1f8] sm:$0xff]
    %1899 = vmatprep.subr.mxu0 0.0
    %1900 = vmatpush1.msra.mxu0 %v1850
    %1901 = vmatprep.subr.mxu0 0.0
    %1902 = vmatpush1.msra.mxu0 %v1849
    %1903 = vmatprep.subr.mxu0 0.0
    %1904 = vmatpush1.msra.mxu0 %v1848
    %1905 = vmatprep.subr.mxu0 0.0
    %1906 = vmatpush1.msra.mxu0 %v1847
    %1907 = vmatprep.subr.mxu0 0.0
    %1908 = vmatpush1.msra.mxu0 %v1846
    %1909 = vmatprep.subr.mxu0 0.0
    %1910 = vmatpush1.msra.mxu0 %v1845
    %1911 = vmatprep.subr.mxu0 0.0
    %1912 = vmatpush1.msra.mxu0 %v1844
    %1913 = vmatprep.subr.mxu0 0.0
    %1914 = vmatpush1.msra.mxu0 %v1843
    %1915 = vmatprep.subr.mxu0 0.0
    %1916 = vmatpush1.msra.mxu0 %v1842
    %1917 = vmatprep.subr.mxu0 0.0
    %1918 = vmatpush1.msra.mxu0 %v1841
    %1919 = vmatprep.subr.mxu0 0.0
    %1920 = vmatpush1.msra.mxu0 %v1840
    %1921 = vmatprep.subr.mxu0 0.0
    %1922 = vmatpush1.msra.mxu0 %v1839
    %1923 = vmatprep.subr.mxu0 0.0
    %1924 = vmatpush1.msra.mxu0 %v1838
    %1925 = vmatprep.subr.mxu0 0.0
    %1926 = vmatpush1.msra.mxu0 %v1837
    %1927 = vmatprep.subr.mxu0 0.0
    %1928 = vmatpush1.msra.mxu0 %v1836
    %1929 = vmatprep.subr.mxu0 0.0
    %1930 = vmatpush1.msra.mxu0 %v1835
    %1931 = vmatprep.subr.mxu0 0.0
    %1932 = vmatpush2.msra.mxu0 %v1866
    %1933 = vmatprep.subr.mxu0 0.0
    %1934 = vmatpush2.msra.mxu0 %v1865
    %1935 = vmatprep.subr.mxu0 0.0
    %1936 = vmatpush2.msra.mxu0 %v1864
    %1937 = vmatprep.subr.mxu0 0.0
    %1938 = vmatpush2.msra.mxu0 %v1863
    %1939 = vmatprep.subr.mxu0 0.0
    %1940 = vmatpush2.msra.mxu0 %v1862
    %1941 = vmatprep.subr.mxu0 0.0
    %1942 = vmatpush2.msra.mxu0 %v1861
    %1943 = vmatprep.subr.mxu0 0.0
    %1944 = vmatpush2.msra.mxu0 %v1860
    %1945 = vmatprep.subr.mxu0 0.0
    %1946 = vmatpush2.msra.mxu0 %v1859
    %1947 = vmatprep.subr.mxu0 0.0
    %1948 = vmatpush2.msra.mxu0 %v1858
    %1949 = vmatprep.subr.mxu0 0.0
    %1950 = vmatpush2.msra.mxu0 %v1857
    %1951 = vmatprep.subr.mxu0 0.0
    %1952 = vmatpush2.msra.mxu0 %v1856
    %1953 = vmatprep.subr.mxu0 0.0
    %1954 = vmatpush2.msra.mxu0 %v1855
    %1955 = vmatprep.subr.mxu0 0.0
    %1956 = vmatpush2.msra.mxu0 %v1854
    %1957 = vmatprep.subr.mxu0 0.0
    %1958 = vmatpush2.msra.mxu0 %v1853
    %1959 = vmatprep.subr.mxu0 0.0
    %1960 = vmatpush2.msra.mxu0 %v1852
    %1961 = vmatprep.subr.mxu0 0.0
    %1962 = vmatpush2.msra.mxu0 %v1851
    %1963 = vmatprep.mubr.f32.mxu0 %v1708
    %1964 = vmatmul.mubr.f32.gmra.mxu0 %v1707
    %v1965 = vpop.f32.mrf.mxu0
    %v1966 = vadd.f32 0.0, %v1965
    %v1967 = vpop.f32.mrf.mxu0
    %1968 = vmatprep.mubr.f32.mxu0 %v1712
    %1969 = vmatmul.mubr.f32.gmra.mxu0 %v1711
    %v1970 = vpop.f32.mrf.mxu0
    %v1971 = vadd.f32 0.0, %v1970
    %v1972 = vpop.f32.mrf.mxu0
    %1973 = vmatprep.mubr.f32.mxu0 %v1716
    %1974 = vmatmul.mubr.f32.gmra.mxu0 %v1715
    %v1975 = vpop.f32.mrf.mxu0
    %v1976 = vadd.f32 0.0, %v1975
    %v1977 = vpop.f32.mrf.mxu0
    %1978 = vmatprep.mubr.f32.mxu0 %v1720
    %1979 = vmatmul.mubr.f32.gmra.mxu0 %v1719
    %v1980 = vpop.f32.mrf.mxu0
    %v1981 = vadd.f32 0.0, %v1980
    %v1982 = vpop.f32.mrf.mxu0
    %1983 = vmatprep.mubr.f32.mxu0 %v1724
    %1984 = vmatmul.mubr.f32.gmra.mxu0 %v1723
    %v1985 = vpop.f32.mrf.mxu0
    %v1986 = vadd.f32 0.0, %v1985
    %v1987 = vpop.f32.mrf.mxu0
    %1988 = vmatprep.mubr.f32.mxu0 %v1728
    %1989 = vmatmul.mubr.f32.gmra.mxu0 %v1727
    %v1990 = vpop.f32.mrf.mxu0
    %v1991 = vadd.f32 0.0, %v1990
    %v1992 = vpop.f32.mrf.mxu0
    %1993 = vmatprep.mubr.f32.mxu0 %v1732
    %1994 = vmatmul.mubr.f32.gmra.mxu0 %v1731
    %v1995 = vpop.f32.mrf.mxu0
    %v1996 = vadd.f32 0.0, %v1995
    %v1997 = vpop.f32.mrf.mxu0
    %1998 = vmatprep.mubr.f32.mxu0 %v1736
    %1999 = vmatmul.mubr.f32.gmra.mxu0 %v1735
    %v2000 = vpop.f32.mrf.mxu0
    %v2001 = vadd.f32 0.0, %v2000
    %v2002 = vpop.f32.mrf.mxu0
    %2003 = vmatprep.mubr.f32.mxu0 %v1740
    %2004 = vmatmul.mubr.f32.gmra.mxu0 %v1739
    %v2005 = vpop.f32.mrf.mxu0
    %v2006 = vadd.f32 0.0, %v2005
    %v2007 = vpop.f32.mrf.mxu0
    %2008 = vmatprep.mubr.f32.mxu0 %v1744
    %2009 = vmatmul.mubr.f32.gmra.mxu0 %v1743
    %v2010 = vpop.f32.mrf.mxu0
    %v2011 = vadd.f32 0.0, %v2010
    %v2012 = vpop.f32.mrf.mxu0
    %2013 = vmatprep.mubr.f32.mxu0 %v1748
    %2014 = vmatmul.mubr.f32.gmra.mxu0 %v1747
    %v2015 = vpop.f32.mrf.mxu0
    %v2016 = vadd.f32 0.0, %v2015
    %v2017 = vpop.f32.mrf.mxu0
    %2018 = vmatprep.mubr.f32.mxu0 %v1752
    %2019 = vmatmul.mubr.f32.gmra.mxu0 %v1751
    %v2020 = vpop.f32.mrf.mxu0
    %v2021 = vadd.f32 0.0, %v2020
    %v2022 = vpop.f32.mrf.mxu0
    %2023 = vmatprep.mubr.f32.mxu0 %v1756
    %2024 = vmatmul.mubr.f32.gmra.mxu0 %v1755
    %v2025 = vpop.f32.mrf.mxu0
    %v2026 = vadd.f32 0.0, %v2025
    %v2027 = vpop.f32.mrf.mxu0
    %2028 = vmatprep.mubr.f32.mxu0 %v1760
    %2029 = vmatmul.mubr.f32.gmra.mxu0 %v1759
    %v2030 = vpop.f32.mrf.mxu0
    %v2031 = vadd.f32 0.0, %v2030
    %v2032 = vpop.f32.mrf.mxu0
    %2033 = vmatprep.mubr.f32.mxu0 %v1764
    %2034 = vmatmul.mubr.f32.gmra.mxu0 %v1763
    %v2035 = vpop.f32.mrf.mxu0
    %v2036 = vadd.f32 0.0, %v2035
    %v2037 = vpop.f32.mrf.mxu0
    %2038 = vmatprep.mubr.f32.mxu0 %v1768
    %2039 = vmatmul.mubr.f32.gmra.mxu0 %v1767
    %v2040 = vpop.f32.mrf.mxu0
    %v2041 = vadd.f32 0.0, %v2040
    %v2042 = vpop.f32.mrf.mxu0
    %2043 = vmatprep.mubr.f32.mxu0 %v1772
    %2044 = vmatmul.mubr.f32.gmra.mxu0 %v1771
    %v2045 = vpop.f32.mrf.mxu0
    %v2046 = vadd.f32 0.0, %v2045
    %v2047 = vpop.f32.mrf.mxu0
    %2048 = vmatprep.mubr.f32.mxu0 %v1776
    %2049 = vmatmul.mubr.f32.gmra.mxu0 %v1775
    %v2050 = vpop.f32.mrf.mxu0
    %v2051 = vadd.f32 0.0, %v2050
    %v2052 = vpop.f32.mrf.mxu0
    %2053 = vmatprep.mubr.f32.mxu0 %v1780
    %2054 = vmatmul.mubr.f32.gmra.mxu0 %v1779
    %v2055 = vpop.f32.mrf.mxu0
    %v2056 = vadd.f32 0.0, %v2055
    %v2057 = vpop.f32.mrf.mxu0
    %2058 = vmatprep.mubr.f32.mxu0 %v1784
    %2059 = vmatmul.mubr.f32.gmra.mxu0 %v1783
    %v2060 = vpop.f32.mrf.mxu0
    %v2061 = vadd.f32 0.0, %v2060
    %v2062 = vpop.f32.mrf.mxu0
    %2063 = vmatprep.mubr.f32.mxu0 %v1788
    %2064 = vmatmul.mubr.f32.gmra.mxu0 %v1787
    %v2065 = vpop.f32.mrf.mxu0
    %v2066 = vadd.f32 0.0, %v2065
    %v2067 = vpop.f32.mrf.mxu0
    %2068 = vmatprep.mubr.f32.mxu0 %v1792
    %2069 = vmatmul.mubr.f32.gmra.mxu0 %v1791
    %v2070 = vpop.f32.mrf.mxu0
    %v2071 = vadd.f32 0.0, %v2070
    %v2072 = vpop.f32.mrf.mxu0
    %2073 = vmatprep.mubr.f32.mxu0 %v1796
    %2074 = vmatmul.mubr.f32.gmra.mxu0 %v1795
    %v2075 = vpop.f32.mrf.mxu0
    %v2076 = vadd.f32 0.0, %v2075
    %v2077 = vpop.f32.mrf.mxu0
    %2078 = vmatprep.mubr.f32.mxu0 %v1800
    %2079 = vmatmul.mubr.f32.gmra.mxu0 %v1799
    %v2080 = vpop.f32.mrf.mxu0
    %v2081 = vadd.f32 0.0, %v2080
    %v2082 = vpop.f32.mrf.mxu0
    %2083 = vmatprep.mubr.f32.mxu0 %v1804
    %2084 = vmatmul.mubr.f32.gmra.mxu0 %v1803
    %v2085 = vpop.f32.mrf.mxu0
    %v2086 = vadd.f32 0.0, %v2085
    %v2087 = vpop.f32.mrf.mxu0
    %2088 = vmatprep.mubr.f32.mxu0 %v1808
    %2089 = vmatmul.mubr.f32.gmra.mxu0 %v1807
    %v2090 = vpop.f32.mrf.mxu0
    %v2091 = vadd.f32 0.0, %v2090
    %v2092 = vpop.f32.mrf.mxu0
    %2093 = vmatprep.mubr.f32.mxu0 %v1812
    %2094 = vmatmul.mubr.f32.gmra.mxu0 %v1811
    %v2095 = vpop.f32.mrf.mxu0
    %v2096 = vadd.f32 0.0, %v2095
    %v2097 = vpop.f32.mrf.mxu0
    %2098 = vmatprep.mubr.f32.mxu0 %v1816
    %2099 = vmatmul.mubr.f32.gmra.mxu0 %v1815
    %v2100 = vpop.f32.mrf.mxu0
    %v2101 = vadd.f32 0.0, %v2100
    %v2102 = vpop.f32.mrf.mxu0
    %2103 = vmatprep.mubr.f32.mxu0 %v1820
    %2104 = vmatmul.mubr.f32.gmra.mxu0 %v1819
    %v2105 = vpop.f32.mrf.mxu0
    %v2106 = vadd.f32 0.0, %v2105
    %v2107 = vpop.f32.mrf.mxu0
    %2108 = vmatprep.mubr.f32.mxu0 %v1824
    %2109 = vmatmul.mubr.f32.gmra.mxu0 %v1823
    %v2110 = vpop.f32.mrf.mxu0
    %v2111 = vadd.f32 0.0, %v2110
    %v2112 = vpop.f32.mrf.mxu0
    %2113 = vmatprep.mubr.f32.mxu0 %v1828
    %2114 = vmatmul.mubr.f32.gmra.mxu0 %v1827
    %v2115 = vpop.f32.mrf.mxu0
    %v2116 = vadd.f32 0.0, %v2115
    %v2117 = vpop.f32.mrf.mxu0
    %2118 = vmatprep.mubr.f32.mxu0 %v1832
    %2119 = vmatmul.mubr.f32.gmra.mxu0 %v1831
    %v2120 = vpop.f32.mrf.mxu0
    %v2121 = vadd.f32 0.0, %v2120
    %v2122 = vpop.f32.mrf.mxu0
    %2123 = vdwg.mxu0
    %2124 = vmatprep.subr.mxu0 0.0
    %2125 = vmatpush1.msra.mxu0 %v1882
    %2126 = vmatprep.subr.mxu0 0.0
    %2127 = vmatpush1.msra.mxu0 %v1881
    %2128 = vmatprep.subr.mxu0 0.0
    %2129 = vmatpush1.msra.mxu0 %v1880
    %2130 = vmatprep.subr.mxu0 0.0
    %2131 = vmatpush1.msra.mxu0 %v1879
    %2132 = vmatprep.subr.mxu0 0.0
    %2133 = vmatpush1.msra.mxu0 %v1878
    %2134 = vmatprep.subr.mxu0 0.0
    %2135 = vmatpush1.msra.mxu0 %v1877
    %2136 = vmatprep.subr.mxu0 0.0
    %2137 = vmatpush1.msra.mxu0 %v1876
    %2138 = vmatprep.subr.mxu0 0.0
    %2139 = vmatpush1.msra.mxu0 %v1875
    %2140 = vmatprep.subr.mxu0 0.0
    %2141 = vmatpush1.msra.mxu0 %v1874
    %2142 = vmatprep.subr.mxu0 0.0
    %2143 = vmatpush1.msra.mxu0 %v1873
    %2144 = vmatprep.subr.mxu0 0.0
    %2145 = vmatpush1.msra.mxu0 %v1872
    %2146 = vmatprep.subr.mxu0 0.0
    %2147 = vmatpush1.msra.mxu0 %v1871
    %2148 = vmatprep.subr.mxu0 0.0
    %2149 = vmatpush1.msra.mxu0 %v1870
    %2150 = vmatprep.subr.mxu0 0.0
    %2151 = vmatpush1.msra.mxu0 %v1869
    %2152 = vmatprep.subr.mxu0 0.0
    %2153 = vmatpush1.msra.mxu0 %v1868
    %2154 = vmatprep.subr.mxu0 0.0
    %2155 = vmatpush1.msra.mxu0 %v1867
    %2156 = vmatprep.subr.mxu0 0.0
    %2157 = vmatpush2.msra.mxu0 %v1898
    %2158 = vmatprep.subr.mxu0 0.0
    %2159 = vmatpush2.msra.mxu0 %v1897
    %2160 = vmatprep.subr.mxu0 0.0
    %2161 = vmatpush2.msra.mxu0 %v1896
    %2162 = vmatprep.subr.mxu0 0.0
    %2163 = vmatpush2.msra.mxu0 %v1895
    %2164 = vmatprep.subr.mxu0 0.0
    %2165 = vmatpush2.msra.mxu0 %v1894
    %2166 = vmatprep.subr.mxu0 0.0
    %2167 = vmatpush2.msra.mxu0 %v1893
    %2168 = vmatprep.subr.mxu0 0.0
    %2169 = vmatpush2.msra.mxu0 %v1892
    %2170 = vmatprep.subr.mxu0 0.0
    %2171 = vmatpush2.msra.mxu0 %v1891
    %2172 = vmatprep.subr.mxu0 0.0
    %2173 = vmatpush2.msra.mxu0 %v1890
    %2174 = vmatprep.subr.mxu0 0.0
    %2175 = vmatpush2.msra.mxu0 %v1889
    %2176 = vmatprep.subr.mxu0 0.0
    %2177 = vmatpush2.msra.mxu0 %v1888
    %2178 = vmatprep.subr.mxu0 0.0
    %2179 = vmatpush2.msra.mxu0 %v1887
    %2180 = vmatprep.subr.mxu0 0.0
    %2181 = vmatpush2.msra.mxu0 %v1886
    %2182 = vmatprep.subr.mxu0 0.0
    %2183 = vmatpush2.msra.mxu0 %v1885
    %2184 = vmatprep.subr.mxu0 0.0
    %2185 = vmatpush2.msra.mxu0 %v1884
    %2186 = vmatprep.subr.mxu0 0.0
    %2187 = vmatpush2.msra.mxu0 %v1883
    %2188 = vmatprep.mubr.f32.mxu0 %v1710
    %2189 = vmatmul.mubr.f32.gmra.mxu0 %v1709
    %v2190 = vpop.f32.mrf.mxu0
    %v2191 = vadd.f32 %v1966, %v2190
    %v2192 = vpop.f32.mrf.mxu0
    %2193 = vmatprep.mubr.f32.mxu0 %v1714
    %2194 = vmatmul.mubr.f32.gmra.mxu0 %v1713
    %v2195 = vpop.f32.mrf.mxu0
    %v2196 = vadd.f32 %v1971, %v2195
    %v2197 = vpop.f32.mrf.mxu0
    %2198 = vmatprep.mubr.f32.mxu0 %v1718
    %2199 = vmatmul.mubr.f32.gmra.mxu0 %v1717
    %v2200 = vpop.f32.mrf.mxu0
    %v2201 = vadd.f32 %v1976, %v2200
    %v2202 = vpop.f32.mrf.mxu0
    %2203 = vmatprep.mubr.f32.mxu0 %v1722
    %2204 = vmatmul.mubr.f32.gmra.mxu0 %v1721
    %v2205 = vpop.f32.mrf.mxu0
    %v2206 = vadd.f32 %v1981, %v2205
    %v2207 = vpop.f32.mrf.mxu0
    %2208 = vmatprep.mubr.f32.mxu0 %v1726
    %2209 = vmatmul.mubr.f32.gmra.mxu0 %v1725
    %v2210 = vpop.f32.mrf.mxu0
    %v2211 = vadd.f32 %v1986, %v2210
    %v2212 = vpop.f32.mrf.mxu0
    %2213 = vmatprep.mubr.f32.mxu0 %v1730
    %2214 = vmatmul.mubr.f32.gmra.mxu0 %v1729
    %v2215 = vpop.f32.mrf.mxu0
    %v2216 = vadd.f32 %v1991, %v2215
    %v2217 = vpop.f32.mrf.mxu0
    %2218 = vmatprep.mubr.f32.mxu0 %v1734
    %2219 = vmatmul.mubr.f32.gmra.mxu0 %v1733
    %v2220 = vpop.f32.mrf.mxu0
    %v2221 = vadd.f32 %v1996, %v2220
    %v2222 = vpop.f32.mrf.mxu0
    %2223 = vmatprep.mubr.f32.mxu0 %v1738
    %2224 = vmatmul.mubr.f32.gmra.mxu0 %v1737
    %v2225 = vpop.f32.mrf.mxu0
    %v2226 = vadd.f32 %v2001, %v2225
    %v2227 = vpop.f32.mrf.mxu0
    %2228 = vmatprep.mubr.f32.mxu0 %v1742
    %2229 = vmatmul.mubr.f32.gmra.mxu0 %v1741
    %v2230 = vpop.f32.mrf.mxu0
    %v2231 = vadd.f32 %v2006, %v2230
    %v2232 = vpop.f32.mrf.mxu0
    %2233 = vmatprep.mubr.f32.mxu0 %v1746
    %2234 = vmatmul.mubr.f32.gmra.mxu0 %v1745
    %v2235 = vpop.f32.mrf.mxu0
    %v2236 = vadd.f32 %v2011, %v2235
    %v2237 = vpop.f32.mrf.mxu0
    %2238 = vmatprep.mubr.f32.mxu0 %v1750
    %2239 = vmatmul.mubr.f32.gmra.mxu0 %v1749
    %v2240 = vpop.f32.mrf.mxu0
    %v2241 = vadd.f32 %v2016, %v2240
    %v2242 = vpop.f32.mrf.mxu0
    %2243 = vmatprep.mubr.f32.mxu0 %v1754
    %2244 = vmatmul.mubr.f32.gmra.mxu0 %v1753
    %v2245 = vpop.f32.mrf.mxu0
    %v2246 = vadd.f32 %v2021, %v2245
    %v2247 = vpop.f32.mrf.mxu0
    %2248 = vmatprep.mubr.f32.mxu0 %v1758
    %2249 = vmatmul.mubr.f32.gmra.mxu0 %v1757
    %v2250 = vpop.f32.mrf.mxu0
    %v2251 = vadd.f32 %v2026, %v2250
    %v2252 = vpop.f32.mrf.mxu0
    %2253 = vmatprep.mubr.f32.mxu0 %v1762
    %2254 = vmatmul.mubr.f32.gmra.mxu0 %v1761
    %v2255 = vpop.f32.mrf.mxu0
    %v2256 = vadd.f32 %v2031, %v2255
    %v2257 = vpop.f32.mrf.mxu0
    %2258 = vmatprep.mubr.f32.mxu0 %v1766
    %2259 = vmatmul.mubr.f32.gmra.mxu0 %v1765
    %v2260 = vpop.f32.mrf.mxu0
    %v2261 = vadd.f32 %v2036, %v2260
    %v2262 = vpop.f32.mrf.mxu0
    %2263 = vmatprep.mubr.f32.mxu0 %v1770
    %2264 = vmatmul.mubr.f32.gmra.mxu0 %v1769
    %v2265 = vpop.f32.mrf.mxu0
    %v2266 = vadd.f32 %v2041, %v2265
    %v2267 = vpop.f32.mrf.mxu0
    %2268 = vmatprep.mubr.f32.mxu0 %v1774
    %2269 = vmatmul.mubr.f32.gmra.mxu0 %v1773
    %v2270 = vpop.f32.mrf.mxu0
    %v2271 = vadd.f32 %v2046, %v2270
    %v2272 = vpop.f32.mrf.mxu0
    %2273 = vmatprep.mubr.f32.mxu0 %v1778
    %2274 = vmatmul.mubr.f32.gmra.mxu0 %v1777
    %v2275 = vpop.f32.mrf.mxu0
    %v2276 = vadd.f32 %v2051, %v2275
    %v2277 = vpop.f32.mrf.mxu0
    %2278 = vmatprep.mubr.f32.mxu0 %v1782
    %2279 = vmatmul.mubr.f32.gmra.mxu0 %v1781
    %v2280 = vpop.f32.mrf.mxu0
    %v2281 = vadd.f32 %v2056, %v2280
    %v2282 = vpop.f32.mrf.mxu0
    %2283 = vmatprep.mubr.f32.mxu0 %v1786
    %2284 = vmatmul.mubr.f32.gmra.mxu0 %v1785
    %v2285 = vpop.f32.mrf.mxu0
    %v2286 = vadd.f32 %v2061, %v2285
    %v2287 = vpop.f32.mrf.mxu0
    %2288 = vmatprep.mubr.f32.mxu0 %v1790
    %2289 = vmatmul.mubr.f32.gmra.mxu0 %v1789
    %v2290 = vpop.f32.mrf.mxu0
    %v2291 = vadd.f32 %v2066, %v2290
    %v2292 = vpop.f32.mrf.mxu0
    %2293 = vmatprep.mubr.f32.mxu0 %v1794
    %2294 = vmatmul.mubr.f32.gmra.mxu0 %v1793
    %v2295 = vpop.f32.mrf.mxu0
    %v2296 = vadd.f32 %v2071, %v2295
    %v2297 = vpop.f32.mrf.mxu0
    %2298 = vmatprep.mubr.f32.mxu0 %v1798
    %2299 = vmatmul.mubr.f32.gmra.mxu0 %v1797
    %v2300 = vpop.f32.mrf.mxu0
    %v2301 = vadd.f32 %v2076, %v2300
    %v2302 = vpop.f32.mrf.mxu0
    %2303 = vmatprep.mubr.f32.mxu0 %v1802
    %2304 = vmatmul.mubr.f32.gmra.mxu0 %v1801
    %v2305 = vpop.f32.mrf.mxu0
    %v2306 = vadd.f32 %v2081, %v2305
    %v2307 = vpop.f32.mrf.mxu0
    %2308 = vmatprep.mubr.f32.mxu0 %v1806
    %2309 = vmatmul.mubr.f32.gmra.mxu0 %v1805
    %v2310 = vpop.f32.mrf.mxu0
    %v2311 = vadd.f32 %v2086, %v2310
    %v2312 = vpop.f32.mrf.mxu0
    %2313 = vmatprep.mubr.f32.mxu0 %v1810
    %2314 = vmatmul.mubr.f32.gmra.mxu0 %v1809
    %v2315 = vpop.f32.mrf.mxu0
    %v2316 = vadd.f32 %v2091, %v2315
    %v2317 = vpop.f32.mrf.mxu0
    %2318 = vmatprep.mubr.f32.mxu0 %v1814
    %2319 = vmatmul.mubr.f32.gmra.mxu0 %v1813
    %v2320 = vpop.f32.mrf.mxu0
    %v2321 = vadd.f32 %v2096, %v2320
    %v2322 = vpop.f32.mrf.mxu0
    %2323 = vmatprep.mubr.f32.mxu0 %v1818
    %2324 = vmatmul.mubr.f32.gmra.mxu0 %v1817
    %v2325 = vpop.f32.mrf.mxu0
    %v2326 = vadd.f32 %v2101, %v2325
    %v2327 = vpop.f32.mrf.mxu0
    %2328 = vmatprep.mubr.f32.mxu0 %v1822
    %2329 = vmatmul.mubr.f32.gmra.mxu0 %v1821
    %v2330 = vpop.f32.mrf.mxu0
    %v2331 = vadd.f32 %v2106, %v2330
    %v2332 = vpop.f32.mrf.mxu0
    %2333 = vmatprep.mubr.f32.mxu0 %v1826
    %2334 = vmatmul.mubr.f32.gmra.mxu0 %v1825
    %v2335 = vpop.f32.mrf.mxu0
    %v2336 = vadd.f32 %v2111, %v2335
    %v2337 = vpop.f32.mrf.mxu0
    %2338 = vmatprep.mubr.f32.mxu0 %v1830
    %2339 = vmatmul.mubr.f32.gmra.mxu0 %v1829
    %v2340 = vpop.f32.mrf.mxu0
    %v2341 = vadd.f32 %v2116, %v2340
    %v2342 = vpop.f32.mrf.mxu0
    %2343 = vmatprep.mubr.f32.mxu0 %v1834
    %2344 = vmatmul.mubr.f32.gmra.mxu0 %v1833
    %v2345 = vpop.f32.mrf.mxu0
    %v2346 = vadd.f32 %v2121, %v2345
    %v2347 = vpop.f32.mrf.mxu0
    %2348 = vdwg.mxu0
    %v2349 = vld [vmem:[%s1] sm:$0xff]
    %v2350 = vld [vmem:[%s1 + $0x8] sm:$0xff]
    %v2351 = vld [vmem:[%s1 + $0x10] sm:$0xff]
    %v2352 = vld [vmem:[%s1 + $0x18] sm:$0xff]
    %v2353 = vld [vmem:[%s1 + $0x20] sm:$0xff]
    %v2354 = vld [vmem:[%s1 + $0x28] sm:$0xff]
    %v2355 = vld [vmem:[%s1 + $0x30] sm:$0xff]
    %v2356 = vld [vmem:[%s1 + $0x38] sm:$0xff]
    %v2357 = vld [vmem:[%s1 + $0x40] sm:$0xff]
    %v2358 = vld [vmem:[%s1 + $0x48] sm:$0xff]
    %v2359 = vld [vmem:[%s1 + $0x50] sm:$0xff]
    %v2360 = vld [vmem:[%s1 + $0x58] sm:$0xff]
    %v2361 = vld [vmem:[%s1 + $0x60] sm:$0xff]
    %v2362 = vld [vmem:[%s1 + $0x68] sm:$0xff]
    %v2363 = vld [vmem:[%s1 + $0x70] sm:$0xff]
    %v2364 = vld [vmem:[%s1 + $0x78] sm:$0xff]
    %v2365 = vld [vmem:[%s1 + $0x80] sm:$0xff]
    %v2366 = vld [vmem:[%s1 + $0x88] sm:$0xff]
    %v2367 = vld [vmem:[%s1 + $0x90] sm:$0xff]
    %v2368 = vld [vmem:[%s1 + $0x98] sm:$0xff]
    %v2369 = vld [vmem:[%s1 + $0xa0] sm:$0xff]
    %v2370 = vld [vmem:[%s1 + $0xa8] sm:$0xff]
    %v2371 = vld [vmem:[%s1 + $0xb0] sm:$0xff]
    %v2372 = vld [vmem:[%s1 + $0xb8] sm:$0xff]
    %v2373 = vld [vmem:[%s1 + $0xc0] sm:$0xff]
    %v2374 = vld [vmem:[%s1 + $0xc8] sm:$0xff]
    %v2375 = vld [vmem:[%s1 + $0xd0] sm:$0xff]
    %v2376 = vld [vmem:[%s1 + $0xd8] sm:$0xff]
    %v2377 = vld [vmem:[%s1 + $0xe0] sm:$0xff]
    %v2378 = vld [vmem:[%s1 + $0xe8] sm:$0xff]
    %v2379 = vld [vmem:[%s1 + $0xf0] sm:$0xff]
    %v2380 = vld [vmem:[%s1 + $0xf8] sm:$0xff]
    %vm2381 = vcmp.eq.f32.partialorder %v2349, 1.0
    %vm2382 = vcmp.eq.f32.partialorder %v2350, 1.0
    %vm2383 = vcmp.eq.f32.partialorder %v2351, 1.0
    %vm2384 = vcmp.eq.f32.partialorder %v2352, 1.0
    %vm2385 = vcmp.eq.f32.partialorder %v2353, 1.0
    %vm2386 = vcmp.eq.f32.partialorder %v2354, 1.0
    %vm2387 = vcmp.eq.f32.partialorder %v2355, 1.0
    %vm2388 = vcmp.eq.f32.partialorder %v2356, 1.0
    %vm2389 = vcmp.eq.f32.partialorder %v2357, 1.0
    %vm2390 = vcmp.eq.f32.partialorder %v2358, 1.0
    %vm2391 = vcmp.eq.f32.partialorder %v2359, 1.0
    %vm2392 = vcmp.eq.f32.partialorder %v2360, 1.0
    %vm2393 = vcmp.eq.f32.partialorder %v2361, 1.0
    %vm2394 = vcmp.eq.f32.partialorder %v2362, 1.0
    %vm2395 = vcmp.eq.f32.partialorder %v2363, 1.0
    %vm2396 = vcmp.eq.f32.partialorder %v2364, 1.0
    %vm2397 = vcmp.eq.f32.partialorder %v2365, 1.0
    %vm2398 = vcmp.eq.f32.partialorder %v2366, 1.0
    %vm2399 = vcmp.eq.f32.partialorder %v2367, 1.0
    %vm2400 = vcmp.eq.f32.partialorder %v2368, 1.0
    %vm2401 = vcmp.eq.f32.partialorder %v2369, 1.0
    %vm2402 = vcmp.eq.f32.partialorder %v2370, 1.0
    %vm2403 = vcmp.eq.f32.partialorder %v2371, 1.0
    %vm2404 = vcmp.eq.f32.partialorder %v2372, 1.0
    %vm2405 = vcmp.eq.f32.partialorder %v2373, 1.0
    %vm2406 = vcmp.eq.f32.partialorder %v2374, 1.0
    %vm2407 = vcmp.eq.f32.partialorder %v2375, 1.0
    %vm2408 = vcmp.eq.f32.partialorder %v2376, 1.0
    %vm2409 = vcmp.eq.f32.partialorder %v2377, 1.0
    %vm2410 = vcmp.eq.f32.partialorder %v2378, 1.0
    %vm2411 = vcmp.eq.f32.partialorder %v2379, 1.0
    %vm2412 = vcmp.eq.f32.partialorder %v2380, 1.0
    %2445 = vrot.lane.b32.xlu0 %v2191, 127
    %v2446 = vpop.permute.xlu0 %2445
    %2447 = vrot.lane.b32.xlu0 %v2196, 127
    %v2448 = vpop.permute.xlu0 %2447
    %2449 = vrot.lane.b32.xlu0 %v2201, 127
    %v2450 = vpop.permute.xlu0 %2449
    %2451 = vrot.lane.b32.xlu0 %v2206, 127
    %v2452 = vpop.permute.xlu0 %2451
    %2453 = vrot.lane.b32.xlu0 %v2211, 127
    %v2454 = vpop.permute.xlu0 %2453
    %2455 = vrot.lane.b32.xlu0 %v2216, 127
    %v2456 = vpop.permute.xlu0 %2455
    %2457 = vrot.lane.b32.xlu0 %v2221, 127
    %v2458 = vpop.permute.xlu0 %2457
    %2459 = vrot.lane.b32.xlu0 %v2226, 127
    %v2460 = vpop.permute.xlu0 %2459
    %2461 = vrot.lane.b32.xlu0 %v2231, 127
    %v2462 = vpop.permute.xlu0 %2461
    %2463 = vrot.lane.b32.xlu0 %v2236, 127
    %v2464 = vpop.permute.xlu0 %2463
    %2465 = vrot.lane.b32.xlu0 %v2241, 127
    %v2466 = vpop.permute.xlu0 %2465
    %2467 = vrot.lane.b32.xlu0 %v2246, 127
    %v2468 = vpop.permute.xlu0 %2467
    %2469 = vrot.lane.b32.xlu0 %v2251, 127
    %v2470 = vpop.permute.xlu0 %2469
    %2471 = vrot.lane.b32.xlu0 %v2256, 127
    %v2472 = vpop.permute.xlu0 %2471
    %2473 = vrot.lane.b32.xlu0 %v2261, 127
    %v2474 = vpop.permute.xlu0 %2473
    %2475 = vrot.lane.b32.xlu0 %v2266, 127
    %v2476 = vpop.permute.xlu0 %2475
    %2477 = vrot.lane.b32.xlu0 %v2271, 127
    %v2478 = vpop.permute.xlu0 %2477
    %2479 = vrot.lane.b32.xlu0 %v2276, 127
    %v2480 = vpop.permute.xlu0 %2479
    %2481 = vrot.lane.b32.xlu0 %v2281, 127
    %v2482 = vpop.permute.xlu0 %2481
    %2483 = vrot.lane.b32.xlu0 %v2286, 127
    %v2484 = vpop.permute.xlu0 %2483
    %2485 = vrot.lane.b32.xlu0 %v2291, 127
    %v2486 = vpop.permute.xlu0 %2485
    %2487 = vrot.lane.b32.xlu0 %v2296, 127
    %v2488 = vpop.permute.xlu0 %2487
    %2489 = vrot.lane.b32.xlu0 %v2301, 127
    %v2490 = vpop.permute.xlu0 %2489
    %2491 = vrot.lane.b32.xlu0 %v2306, 127
    %v2492 = vpop.permute.xlu0 %2491
    %2493 = vrot.lane.b32.xlu0 %v2311, 127
    %v2494 = vpop.permute.xlu0 %2493
    %2495 = vrot.lane.b32.xlu0 %v2316, 127
    %v2496 = vpop.permute.xlu0 %2495
    %2497 = vrot.lane.b32.xlu0 %v2321, 127
    %v2498 = vpop.permute.xlu0 %2497
    %2499 = vrot.lane.b32.xlu0 %v2326, 127
    %v2500 = vpop.permute.xlu0 %2499
    %2501 = vrot.lane.b32.xlu0 %v2331, 127
    %v2502 = vpop.permute.xlu0 %2501
    %2503 = vrot.lane.b32.xlu0 %v2336, 127
    %v2504 = vpop.permute.xlu0 %2503
    %2505 = vrot.lane.b32.xlu0 %v2341, 127
    %v2506 = vpop.permute.xlu0 %2505
    %2507 = vrot.lane.b32.xlu0 %v2346, 127
    %v2508 = vpop.permute.xlu0 %2507
    %v2541 = vsel %vm2381, %v2191, %v2446
    %v2542 = vsel %vm2382, %v2196, %v2448
    %v2543 = vsel %vm2383, %v2201, %v2450
    %v2544 = vsel %vm2384, %v2206, %v2452
    %v2545 = vsel %vm2385, %v2211, %v2454
    %v2546 = vsel %vm2386, %v2216, %v2456
    %v2547 = vsel %vm2387, %v2221, %v2458
    %v2548 = vsel %vm2388, %v2226, %v2460
    %v2549 = vsel %vm2389, %v2231, %v2462
    %v2550 = vsel %vm2390, %v2236, %v2464
    %v2551 = vsel %vm2391, %v2241, %v2466
    %v2552 = vsel %vm2392, %v2246, %v2468
    %v2553 = vsel %vm2393, %v2251, %v2470
    %v2554 = vsel %vm2394, %v2256, %v2472
    %v2555 = vsel %vm2395, %v2261, %v2474
    %v2556 = vsel %vm2396, %v2266, %v2476
    %v2557 = vsel %vm2397, %v2271, %v2478
    %v2558 = vsel %vm2398, %v2276, %v2480
    %v2559 = vsel %vm2399, %v2281, %v2482
    %v2560 = vsel %vm2400, %v2286, %v2484
    %v2561 = vsel %vm2401, %v2291, %v2486
    %v2562 = vsel %vm2402, %v2296, %v2488
    %v2563 = vsel %vm2403, %v2301, %v2490
    %v2564 = vsel %vm2404, %v2306, %v2492
    %v2565 = vsel %vm2405, %v2311, %v2494
    %v2566 = vsel %vm2406, %v2316, %v2496
    %v2567 = vsel %vm2407, %v2321, %v2498
    %v2568 = vsel %vm2408, %v2326, %v2500
    %v2569 = vsel %vm2409, %v2331, %v2502
    %v2570 = vsel %vm2410, %v2336, %v2504
    %v2571 = vsel %vm2411, %v2341, %v2506
    %v2572 = vsel %vm2412, %v2346, %v2508
    %s2573 = sld [smem:[#allocation2]]
    %s2574 = sld [smem:[#allocation2 + $0x1]]
    %v2575 = vstv %s2573
    %v2576 = vstv %s2574
    %v2577 = vsel %vm2381, %v2575, %v2576
    %v2578 = vsel %vm2382, %v2575, %v2576
    %v2579 = vsel %vm2383, %v2575, %v2576
    %v2580 = vsel %vm2384, %v2575, %v2576
    %v2581 = vsel %vm2385, %v2575, %v2576
    %v2582 = vsel %vm2386, %v2575, %v2576
    %v2583 = vsel %vm2387, %v2575, %v2576
    %v2584 = vsel %vm2388, %v2575, %v2576
    %v2585 = vsel %vm2389, %v2575, %v2576
    %v2586 = vsel %vm2390, %v2575, %v2576
    %v2587 = vsel %vm2391, %v2575, %v2576
    %v2588 = vsel %vm2392, %v2575, %v2576
    %v2589 = vsel %vm2393, %v2575, %v2576
    %v2590 = vsel %vm2394, %v2575, %v2576
    %v2591 = vsel %vm2395, %v2575, %v2576
    %v2592 = vsel %vm2396, %v2575, %v2576
    %v2593 = vsel %vm2397, %v2575, %v2576
    %v2594 = vsel %vm2398, %v2575, %v2576
    %v2595 = vsel %vm2399, %v2575, %v2576
    %v2596 = vsel %vm2400, %v2575, %v2576
    %v2597 = vsel %vm2401, %v2575, %v2576
    %v2598 = vsel %vm2402, %v2575, %v2576
    %v2599 = vsel %vm2403, %v2575, %v2576
    %v2600 = vsel %vm2404, %v2575, %v2576
    %v2601 = vsel %vm2405, %v2575, %v2576
    %v2602 = vsel %vm2406, %v2575, %v2576
    %v2603 = vsel %vm2407, %v2575, %v2576
    %v2604 = vsel %vm2408, %v2575, %v2576
    %v2605 = vsel %vm2409, %v2575, %v2576
    %v2606 = vsel %vm2410, %v2575, %v2576
    %v2607 = vsel %vm2411, %v2575, %v2576
    %v2608 = vsel %vm2412, %v2575, %v2576
    %v2609 = vadd.f32 %v2541, %v2577
    %v2610 = vadd.f32 %v2542, %v2578
    %v2611 = vadd.f32 %v2543, %v2579
    %v2612 = vadd.f32 %v2544, %v2580
    %v2613 = vadd.f32 %v2545, %v2581
    %v2614 = vadd.f32 %v2546, %v2582
    %v2615 = vadd.f32 %v2547, %v2583
    %v2616 = vadd.f32 %v2548, %v2584
    %v2617 = vadd.f32 %v2549, %v2585
    %v2618 = vadd.f32 %v2550, %v2586
    %v2619 = vadd.f32 %v2551, %v2587
    %v2620 = vadd.f32 %v2552, %v2588
    %v2621 = vadd.f32 %v2553, %v2589
    %v2622 = vadd.f32 %v2554, %v2590
    %v2623 = vadd.f32 %v2555, %v2591
    %v2624 = vadd.f32 %v2556, %v2592
    %v2625 = vadd.f32 %v2557, %v2593
    %v2626 = vadd.f32 %v2558, %v2594
    %v2627 = vadd.f32 %v2559, %v2595
    %v2628 = vadd.f32 %v2560, %v2596
    %v2629 = vadd.f32 %v2561, %v2597
    %v2630 = vadd.f32 %v2562, %v2598
    %v2631 = vadd.f32 %v2563, %v2599
    %v2632 = vadd.f32 %v2564, %v2600
    %v2633 = vadd.f32 %v2565, %v2601
    %v2634 = vadd.f32 %v2566, %v2602
    %v2635 = vadd.f32 %v2567, %v2603
    %v2636 = vadd.f32 %v2568, %v2604
    %v2637 = vadd.f32 %v2569, %v2605
    %v2638 = vadd.f32 %v2570, %v2606
    %v2639 = vadd.f32 %v2571, %v2607
    %v2640 = vadd.f32 %v2572, %v2608
    %v2641 = vlaneseq
    %v2642 = vshrl.u32 %v2641, 7
    %v2643 = vadd.s32 %v2642, 8
    %v2644 = vadd.s32 %v2642, 16
    %v2645 = vadd.s32 %v2642, 24
    %v2646 = vadd.s32 %v2642, 32
    %v2647 = vadd.s32 %v2642, 40
    %v2648 = vadd.s32 %v2642, 48
    %v2649 = vadd.s32 %v2642, 56
    %v2650 = vadd.s32 %v2642, 64
    %v2651 = vadd.s32 %v2642, 72
    %v2652 = vadd.s32 %v2642, 80
    %v2653 = vadd.s32 %v2642, 88
    %v2654 = vadd.s32 %v2642, 96
    %v2655 = vadd.s32 %v2642, 104
    %v2656 = vadd.s32 %v2642, 112
    %v2657 = vadd.s32 %v2642, 120
    %v2658 = vadd.s32 %v2642, 128
    %v2659 = vadd.s32 %v2642, 136
    %v2660 = vadd.s32 %v2642, 144
    %v2661 = vadd.s32 %v2642, 152
    %v2662 = vadd.s32 %v2642, 160
    %v2663 = vadd.s32 %v2642, 168
    %v2664 = vadd.s32 %v2642, 176
    %v2665 = vadd.s32 %v2642, 184
    %v2666 = vadd.s32 %v2642, 192
    %v2667 = vadd.s32 %v2642, 200
    %v2668 = vadd.s32 %v2642, 208
    %v2669 = vadd.s32 %v2642, 216
    %v2670 = vadd.s32 %v2642, 224
    %v2671 = vadd.s32 %v2642, 232
    %v2672 = vadd.s32 %v2642, 240
    %v2673 = vadd.s32 %v2642, 248
    %s2674 = smul.u32 0, 256
    %v2675 = vstv %s2674
    %v2676 = vadd.s32 %v2642, %v2675
    %v2677 = vadd.s32 %v2643, %v2675
    %v2678 = vadd.s32 %v2644, %v2675
    %v2679 = vadd.s32 %v2645, %v2675
    %v2680 = vadd.s32 %v2646, %v2675
    %v2681 = vadd.s32 %v2647, %v2675
    %v2682 = vadd.s32 %v2648, %v2675
    %v2683 = vadd.s32 %v2649, %v2675
    %v2684 = vadd.s32 %v2650, %v2675
    %v2685 = vadd.s32 %v2651, %v2675
    %v2686 = vadd.s32 %v2652, %v2675
    %v2687 = vadd.s32 %v2653, %v2675
    %v2688 = vadd.s32 %v2654, %v2675
    %v2689 = vadd.s32 %v2655, %v2675
    %v2690 = vadd.s32 %v2656, %v2675
    %v2691 = vadd.s32 %v2657, %v2675
    %v2692 = vadd.s32 %v2658, %v2675
    %v2693 = vadd.s32 %v2659, %v2675
    %v2694 = vadd.s32 %v2660, %v2675
    %v2695 = vadd.s32 %v2661, %v2675
    %v2696 = vadd.s32 %v2662, %v2675
    %v2697 = vadd.s32 %v2663, %v2675
    %v2698 = vadd.s32 %v2664, %v2675
    %v2699 = vadd.s32 %v2665, %v2675
    %v2700 = vadd.s32 %v2666, %v2675
    %v2701 = vadd.s32 %v2667, %v2675
    %v2702 = vadd.s32 %v2668, %v2675
    %v2703 = vadd.s32 %v2669, %v2675
    %v2704 = vadd.s32 %v2670, %v2675
    %v2705 = vadd.s32 %v2671, %v2675
    %v2706 = vadd.s32 %v2672, %v2675
    %v2707 = vadd.s32 %v2673, %v2675
    %vm2708 = vcmp.lt.s32.totalorder %v2676, 200
    %vm2709 = vcmp.lt.s32.totalorder %v2677, 200
    %vm2710 = vcmp.lt.s32.totalorder %v2678, 200
    %vm2711 = vcmp.lt.s32.totalorder %v2679, 200
    %vm2712 = vcmp.lt.s32.totalorder %v2680, 200
    %vm2713 = vcmp.lt.s32.totalorder %v2681, 200
    %vm2714 = vcmp.lt.s32.totalorder %v2682, 200
    %vm2715 = vcmp.lt.s32.totalorder %v2683, 200
    %vm2716 = vcmp.lt.s32.totalorder %v2684, 200
    %vm2717 = vcmp.lt.s32.totalorder %v2685, 200
    %vm2718 = vcmp.lt.s32.totalorder %v2686, 200
    %vm2719 = vcmp.lt.s32.totalorder %v2687, 200
    %vm2720 = vcmp.lt.s32.totalorder %v2688, 200
    %vm2721 = vcmp.lt.s32.totalorder %v2689, 200
    %vm2722 = vcmp.lt.s32.totalorder %v2690, 200
    %vm2723 = vcmp.lt.s32.totalorder %v2691, 200
    %vm2724 = vcmp.lt.s32.totalorder %v2692, 200
    %vm2725 = vcmp.lt.s32.totalorder %v2693, 200
    %vm2726 = vcmp.lt.s32.totalorder %v2694, 200
    %vm2727 = vcmp.lt.s32.totalorder %v2695, 200
    %vm2728 = vcmp.lt.s32.totalorder %v2696, 200
    %vm2729 = vcmp.lt.s32.totalorder %v2697, 200
    %vm2730 = vcmp.lt.s32.totalorder %v2698, 200
    %vm2731 = vcmp.lt.s32.totalorder %v2699, 200
    %vm2732 = vcmp.lt.s32.totalorder %v2700, 200
    %vm2733 = vcmp.lt.s32.totalorder %v2701, 200
    %vm2734 = vcmp.lt.s32.totalorder %v2702, 200
    %vm2735 = vcmp.lt.s32.totalorder %v2703, 200
    %vm2736 = vcmp.lt.s32.totalorder %v2704, 200
    %vm2737 = vcmp.lt.s32.totalorder %v2705, 200
    %vm2738 = vcmp.lt.s32.totalorder %v2706, 200
    %vm2739 = vcmp.lt.s32.totalorder %v2707, 200
    %v2740 = vsel %vm2708, 1, 0
    %v2741 = vsel %vm2709, 1, 0
    %v2742 = vsel %vm2710, 1, 0
    %v2743 = vsel %vm2711, 1, 0
    %v2744 = vsel %vm2712, 1, 0
    %v2745 = vsel %vm2713, 1, 0
    %v2746 = vsel %vm2714, 1, 0
    %v2747 = vsel %vm2715, 1, 0
    %v2748 = vsel %vm2716, 1, 0
    %v2749 = vsel %vm2717, 1, 0
    %v2750 = vsel %vm2718, 1, 0
    %v2751 = vsel %vm2719, 1, 0
    %v2752 = vsel %vm2720, 1, 0
    %v2753 = vsel %vm2721, 1, 0
    %v2754 = vsel %vm2722, 1, 0
    %v2755 = vsel %vm2723, 1, 0
    %v2756 = vsel %vm2724, 1, 0
    %v2757 = vsel %vm2725, 1, 0
    %v2758 = vsel %vm2726, 1, 0
    %v2759 = vsel %vm2727, 1, 0
    %v2760 = vsel %vm2728, 1, 0
    %v2761 = vsel %vm2729, 1, 0
    %v2762 = vsel %vm2730, 1, 0
    %v2763 = vsel %vm2731, 1, 0
    %v2764 = vsel %vm2732, 1, 0
    %v2765 = vsel %vm2733, 1, 0
    %v2766 = vsel %vm2734, 1, 0
    %v2767 = vsel %vm2735, 1, 0
    %v2768 = vsel %vm2736, 1, 0
    %v2769 = vsel %vm2737, 1, 0
    %v2770 = vsel %vm2738, 1, 0
    %v2771 = vsel %vm2739, 1, 0
    %v2772 = vcvt.s32.f32 %v2740
    %v2773 = vcvt.s32.f32 %v2741
    %v2774 = vcvt.s32.f32 %v2742
    %v2775 = vcvt.s32.f32 %v2743
    %v2776 = vcvt.s32.f32 %v2744
    %v2777 = vcvt.s32.f32 %v2745
    %v2778 = vcvt.s32.f32 %v2746
    %v2779 = vcvt.s32.f32 %v2747
    %v2780 = vcvt.s32.f32 %v2748
    %v2781 = vcvt.s32.f32 %v2749
    %v2782 = vcvt.s32.f32 %v2750
    %v2783 = vcvt.s32.f32 %v2751
    %v2784 = vcvt.s32.f32 %v2752
    %v2785 = vcvt.s32.f32 %v2753
    %v2786 = vcvt.s32.f32 %v2754
    %v2787 = vcvt.s32.f32 %v2755
    %v2788 = vcvt.s32.f32 %v2756
    %v2789 = vcvt.s32.f32 %v2757
    %v2790 = vcvt.s32.f32 %v2758
    %v2791 = vcvt.s32.f32 %v2759
    %v2792 = vcvt.s32.f32 %v2760
    %v2793 = vcvt.s32.f32 %v2761
    %v2794 = vcvt.s32.f32 %v2762
    %v2795 = vcvt.s32.f32 %v2763
    %v2796 = vcvt.s32.f32 %v2764
    %v2797 = vcvt.s32.f32 %v2765
    %v2798 = vcvt.s32.f32 %v2766
    %v2799 = vcvt.s32.f32 %v2767
    %v2800 = vcvt.s32.f32 %v2768
    %v2801 = vcvt.s32.f32 %v2769
    %v2802 = vcvt.s32.f32 %v2770
    %v2803 = vcvt.s32.f32 %v2771
    %2836 = vrot.lane.b32.xlu0 %v2349, 127
    %v2837 = vpop.permute.xlu0 %2836
    %2838 = vrot.lane.b32.xlu0 %v2350, 127
    %v2839 = vpop.permute.xlu0 %2838
    %2840 = vrot.lane.b32.xlu0 %v2351, 127
    %v2841 = vpop.permute.xlu0 %2840
    %2842 = vrot.lane.b32.xlu0 %v2352, 127
    %v2843 = vpop.permute.xlu0 %2842
    %2844 = vrot.lane.b32.xlu0 %v2353, 127
    %v2845 = vpop.permute.xlu0 %2844
    %2846 = vrot.lane.b32.xlu0 %v2354, 127
    %v2847 = vpop.permute.xlu0 %2846
    %2848 = vrot.lane.b32.xlu0 %v2355, 127
    %v2849 = vpop.permute.xlu0 %2848
    %2850 = vrot.lane.b32.xlu0 %v2356, 127
    %v2851 = vpop.permute.xlu0 %2850
    %2852 = vrot.lane.b32.xlu0 %v2357, 127
    %v2853 = vpop.permute.xlu0 %2852
    %2854 = vrot.lane.b32.xlu0 %v2358, 127
    %v2855 = vpop.permute.xlu0 %2854
    %2856 = vrot.lane.b32.xlu0 %v2359, 127
    %v2857 = vpop.permute.xlu0 %2856
    %2858 = vrot.lane.b32.xlu0 %v2360, 127
    %v2859 = vpop.permute.xlu0 %2858
    %2860 = vrot.lane.b32.xlu0 %v2361, 127
    %v2861 = vpop.permute.xlu0 %2860
    %2862 = vrot.lane.b32.xlu0 %v2362, 127
    %v2863 = vpop.permute.xlu0 %2862
    %2864 = vrot.lane.b32.xlu0 %v2363, 127
    %v2865 = vpop.permute.xlu0 %2864
    %2866 = vrot.lane.b32.xlu0 %v2364, 127
    %v2867 = vpop.permute.xlu0 %2866
    %2868 = vrot.lane.b32.xlu0 %v2365, 127
    %v2869 = vpop.permute.xlu0 %2868
    %2870 = vrot.lane.b32.xlu0 %v2366, 127
    %v2871 = vpop.permute.xlu0 %2870
    %2872 = vrot.lane.b32.xlu0 %v2367, 127
    %v2873 = vpop.permute.xlu0 %2872
    %2874 = vrot.lane.b32.xlu0 %v2368, 127
    %v2875 = vpop.permute.xlu0 %2874
    %2876 = vrot.lane.b32.xlu0 %v2369, 127
    %v2877 = vpop.permute.xlu0 %2876
    %2878 = vrot.lane.b32.xlu0 %v2370, 127
    %v2879 = vpop.permute.xlu0 %2878
    %2880 = vrot.lane.b32.xlu0 %v2371, 127
    %v2881 = vpop.permute.xlu0 %2880
    %2882 = vrot.lane.b32.xlu0 %v2372, 127
    %v2883 = vpop.permute.xlu0 %2882
    %2884 = vrot.lane.b32.xlu0 %v2373, 127
    %v2885 = vpop.permute.xlu0 %2884
    %2886 = vrot.lane.b32.xlu0 %v2374, 127
    %v2887 = vpop.permute.xlu0 %2886
    %2888 = vrot.lane.b32.xlu0 %v2375, 127
    %v2889 = vpop.permute.xlu0 %2888
    %2890 = vrot.lane.b32.xlu0 %v2376, 127
    %v2891 = vpop.permute.xlu0 %2890
    %2892 = vrot.lane.b32.xlu0 %v2377, 127
    %v2893 = vpop.permute.xlu0 %2892
    %2894 = vrot.lane.b32.xlu0 %v2378, 127
    %v2895 = vpop.permute.xlu0 %2894
    %2896 = vrot.lane.b32.xlu0 %v2379, 127
    %v2897 = vpop.permute.xlu0 %2896
    %2898 = vrot.lane.b32.xlu0 %v2380, 127
    %v2899 = vpop.permute.xlu0 %2898
    %v2932 = vsub.f32 %v2609, %v2837
    %v2933 = vsub.f32 %v2610, %v2839
    %v2934 = vsub.f32 %v2611, %v2841
    %v2935 = vsub.f32 %v2612, %v2843
    %v2936 = vsub.f32 %v2613, %v2845
    %v2937 = vsub.f32 %v2614, %v2847
    %v2938 = vsub.f32 %v2615, %v2849
    %v2939 = vsub.f32 %v2616, %v2851
    %v2940 = vsub.f32 %v2617, %v2853
    %v2941 = vsub.f32 %v2618, %v2855
    %v2942 = vsub.f32 %v2619, %v2857
    %v2943 = vsub.f32 %v2620, %v2859
    %v2944 = vsub.f32 %v2621, %v2861
    %v2945 = vsub.f32 %v2622, %v2863
    %v2946 = vsub.f32 %v2623, %v2865
    %v2947 = vsub.f32 %v2624, %v2867
    %v2948 = vsub.f32 %v2625, %v2869
    %v2949 = vsub.f32 %v2626, %v2871
    %v2950 = vsub.f32 %v2627, %v2873
    %v2951 = vsub.f32 %v2628, %v2875
    %v2952 = vsub.f32 %v2629, %v2877
    %v2953 = vsub.f32 %v2630, %v2879
    %v2954 = vsub.f32 %v2631, %v2881
    %v2955 = vsub.f32 %v2632, %v2883
    %v2956 = vsub.f32 %v2633, %v2885
    %v2957 = vsub.f32 %v2634, %v2887
    %v2958 = vsub.f32 %v2635, %v2889
    %v2959 = vsub.f32 %v2636, %v2891
    %v2960 = vsub.f32 %v2637, %v2893
    %v2961 = vsub.f32 %v2638, %v2895
    %v2962 = vsub.f32 %v2639, %v2897
    %v2963 = vsub.f32 %v2640, %v2899
    %v2964 = vmul.f32 %v2932, %v2772
    %v2965 = vmul.f32 %v2933, %v2773
    %v2966 = vmul.f32 %v2934, %v2774
    %v2967 = vmul.f32 %v2935, %v2775
    %v2968 = vmul.f32 %v2936, %v2776
    %v2969 = vmul.f32 %v2937, %v2777
    %v2970 = vmul.f32 %v2938, %v2778
    %v2971 = vmul.f32 %v2939, %v2779
    %v2972 = vmul.f32 %v2940, %v2780
    %v2973 = vmul.f32 %v2941, %v2781
    %v2974 = vmul.f32 %v2942, %v2782
    %v2975 = vmul.f32 %v2943, %v2783
    %v2976 = vmul.f32 %v2944, %v2784
    %v2977 = vmul.f32 %v2945, %v2785
    %v2978 = vmul.f32 %v2946, %v2786
    %v2979 = vmul.f32 %v2947, %v2787
    %v2980 = vmul.f32 %v2948, %v2788
    %v2981 = vmul.f32 %v2949, %v2789
    %v2982 = vmul.f32 %v2950, %v2790
    %v2983 = vmul.f32 %v2951, %v2791
    %v2984 = vmul.f32 %v2952, %v2792
    %v2985 = vmul.f32 %v2953, %v2793
    %v2986 = vmul.f32 %v2954, %v2794
    %v2987 = vmul.f32 %v2955, %v2795
    %v2988 = vmul.f32 %v2956, %v2796
    %v2989 = vmul.f32 %v2957, %v2797
    %v2990 = vmul.f32 %v2958, %v2798
    %v2991 = vmul.f32 %v2959, %v2799
    %v2992 = vmul.f32 %v2960, %v2800
    %v2993 = vmul.f32 %v2961, %v2801
    %v2994 = vmul.f32 %v2962, %v2802
    %v2995 = vmul.f32 %v2963, %v2803
    %v2996 = vmul.f32 %v2964, %v2964
    %v2997 = vmul.f32 %v2965, %v2965
    %v2998 = vmul.f32 %v2966, %v2966
    %v2999 = vmul.f32 %v2967, %v2967
    %v3000 = vmul.f32 %v2968, %v2968
    %v3001 = vmul.f32 %v2969, %v2969
    %v3002 = vmul.f32 %v2970, %v2970
    %v3003 = vmul.f32 %v2971, %v2971
    %v3004 = vmul.f32 %v2972, %v2972
    %v3005 = vmul.f32 %v2973, %v2973
    %v3006 = vmul.f32 %v2974, %v2974
    %v3007 = vmul.f32 %v2975, %v2975
    %v3008 = vmul.f32 %v2976, %v2976
    %v3009 = vmul.f32 %v2977, %v2977
    %v3010 = vmul.f32 %v2978, %v2978
    %v3011 = vmul.f32 %v2979, %v2979
    %v3012 = vmul.f32 %v2980, %v2980
    %v3013 = vmul.f32 %v2981, %v2981
    %v3014 = vmul.f32 %v2982, %v2982
    %v3015 = vmul.f32 %v2983, %v2983
    %v3016 = vmul.f32 %v2984, %v2984
    %v3017 = vmul.f32 %v2985, %v2985
    %v3018 = vmul.f32 %v2986, %v2986
    %v3019 = vmul.f32 %v2987, %v2987
    %v3020 = vmul.f32 %v2988, %v2988
    %v3021 = vmul.f32 %v2989, %v2989
    %v3022 = vmul.f32 %v2990, %v2990
    %v3023 = vmul.f32 %v2991, %v2991
    %v3024 = vmul.f32 %v2992, %v2992
    %v3025 = vmul.f32 %v2993, %v2993
    %v3026 = vmul.f32 %v2994, %v2994
    %v3027 = vmul.f32 %v2995, %v2995
    %vm3028 = vcmask 7168
    %v3029 = vsel %vm3028, %v2996, 0.0
    %v3030 = vsel %vm3028, %v2997, 0.0
    %v3031 = vadd.f32 %v3029, %v3030
    %v3032 = vsel %vm3028, %v2998, 0.0
    %v3033 = vadd.f32 %v3031, %v3032
    %v3034 = vsel %vm3028, %v2999, 0.0
    %v3035 = vadd.f32 %v3033, %v3034
    %v3036 = vsel %vm3028, %v3000, 0.0
    %v3037 = vadd.f32 %v3035, %v3036
    %v3038 = vsel %vm3028, %v3001, 0.0
    %v3039 = vadd.f32 %v3037, %v3038
    %v3040 = vsel %vm3028, %v3002, 0.0
    %v3041 = vadd.f32 %v3039, %v3040
    %v3042 = vsel %vm3028, %v3003, 0.0
    %v3043 = vadd.f32 %v3041, %v3042
    %v3044 = vsel %vm3028, %v3004, 0.0
    %v3045 = vadd.f32 %v3043, %v3044
    %v3046 = vsel %vm3028, %v3005, 0.0
    %v3047 = vadd.f32 %v3045, %v3046
    %v3048 = vsel %vm3028, %v3006, 0.0
    %v3049 = vadd.f32 %v3047, %v3048
    %v3050 = vsel %vm3028, %v3007, 0.0
    %v3051 = vadd.f32 %v3049, %v3050
    %v3052 = vsel %vm3028, %v3008, 0.0
    %v3053 = vadd.f32 %v3051, %v3052
    %v3054 = vsel %vm3028, %v3009, 0.0
    %v3055 = vadd.f32 %v3053, %v3054
    %v3056 = vsel %vm3028, %v3010, 0.0
    %v3057 = vadd.f32 %v3055, %v3056
    %v3058 = vsel %vm3028, %v3011, 0.0
    %v3059 = vadd.f32 %v3057, %v3058
    %v3060 = vsel %vm3028, %v3012, 0.0
    %v3061 = vadd.f32 %v3059, %v3060
    %v3062 = vsel %vm3028, %v3013, 0.0
    %v3063 = vadd.f32 %v3061, %v3062
    %v3064 = vsel %vm3028, %v3014, 0.0
    %v3065 = vadd.f32 %v3063, %v3064
    %v3066 = vsel %vm3028, %v3015, 0.0
    %v3067 = vadd.f32 %v3065, %v3066
    %v3068 = vsel %vm3028, %v3016, 0.0
    %v3069 = vadd.f32 %v3067, %v3068
    %v3070 = vsel %vm3028, %v3017, 0.0
    %v3071 = vadd.f32 %v3069, %v3070
    %v3072 = vsel %vm3028, %v3018, 0.0
    %v3073 = vadd.f32 %v3071, %v3072
    %v3074 = vsel %vm3028, %v3019, 0.0
    %v3075 = vadd.f32 %v3073, %v3074
    %v3076 = vsel %vm3028, %v3020, 0.0
    %v3077 = vadd.f32 %v3075, %v3076
    %v3078 = vsel %vm3028, %v3021, 0.0
    %v3079 = vadd.f32 %v3077, %v3078
    %v3080 = vsel %vm3028, %v3022, 0.0
    %v3081 = vadd.f32 %v3079, %v3080
    %v3082 = vsel %vm3028, %v3023, 0.0
    %v3083 = vadd.f32 %v3081, %v3082
    %v3084 = vsel %vm3028, %v3024, 0.0
    %v3085 = vadd.f32 %v3083, %v3084
    %v3086 = vsel %vm3028, %v3025, 0.0
    %v3087 = vadd.f32 %v3085, %v3086
    %v3088 = vsel %vm3028, %v3026, 0.0
    %v3089 = vadd.f32 %v3087, %v3088
    %v3090 = vsel %vm3028, %v3027, 0.0
    %v3091 = vadd.f32 %v3089, %v3090
    %3092 = vadd.xlane.f32.xlu0 %v3091
    %v3093 = vpop.xlane.xlu0 %3092
    %v3094 = vrot.slane %v3093, 4
    %v3095 = vadd.f32 %v3093, %v3094
    %v3096 = vrot.slane %v3095, 2
    %v3097 = vadd.f32 %v3095, %v3096
    %v3098 = vrot.slane %v3097, 1
    %v3099 = vadd.f32 %v3097, %v3098
    %s3100 = vtos %v3099
    %s3101 = smul.f32 %s3100, 0.005
    %v3102 = vstv %s3101
    %3103 = vst [vmem:[#allocation5] sm:$0xff] %v3102
    // Predicated region
    $region46: #{tpu_custom_call.1} parent=1 // pred_check
      _
    $region47: #{tpu_custom_call.1} parent=1 // pred_check_branch
      %3105 = sbr.rel (0) target = $region49
    $region48: #{tpu_custom_call.1} parent=1 // pred_region
      %s3107 = ssub.s32 128, 128
      %3108 = vsyncadd [#allocation3], %s3107
      %s3110 = sshll.u32 [#allocation5], 4
      %s3111 = int_to_ptr.vmem [resolvable:$true] %s3110
      %3113 = dma.vmem_to_hbm [thread:$0]  %s3111, 128, %s10, [#allocation3]
    $region49: #{tpu_custom_call.1} parent=1 // pred_fallthru
      _
    // Predicated region
    $region50: #{tpu_custom_call.1} parent=1 // pred_check
      _
    $region51: #{tpu_custom_call.1} parent=1 // pred_check_branch
      %3115 = sbr.rel (0) target = $region53
    $region52: #{tpu_custom_call.1} parent=1 // pred_region
      %3116 = dma.done [#allocation3], 128
    $region53: #{tpu_custom_call.1} parent=1 // pred_fallthru
      _
    %3117 = vsyncpa [#allocation3], 1
    %3118 = vsyncpa [#allocation4], 1

</llo_original>
